<compile_context>
chip_gen: v6e
topology: v6e:2x2x1
jax: 0.10.0
libtpu: 0.0.40
codegen_flags: <defaults>
</compile_context>

<pallas_src>
import jax
import jax.numpy as jnp
from jax.experimental import pallas as pl
from jax.experimental.pallas import tpu as pltpu  # noqa: F401  (TPU backend extensions)

# ---- model dims (small, consistent with the module's __init__) ----
BATCH = 2
SEQ = 8
D_MODEL = 32
D_FF = 64
NUM_HEADS = 4
EPS = 1e-6     # LayerNorm eps
LANES = 128    # lane width for the padded weight / parameter slabs


def encoder_layer_kernel(x_ref, bias_ref, w_ref, p_ref, o_ref):
    N, D = x_ref.shape                 # N = B*S
    HB, S, _ = bias_ref.shape          # HB = NUM_HEADS * B
    H = NUM_HEADS
    B = HB // H
    dk = D // H
    DFF = D_FF
    scale = 1.0 / (dk ** 0.5)

    x = x_ref[...]                     # (N, D)
    gamma = p_ref[2:3, 0:D]            # (1, D)
    beta = p_ref[3:4, 0:D]             # (1, D)

    def layer_norm(v):
        mean = jnp.mean(v, axis=-1, keepdims=True)
        var = jnp.mean((v - mean) ** 2, axis=-1, keepdims=True)
        return (v - mean) * jax.lax.rsqrt(var + EPS) * gamma + beta

    # ---------------- fused QKV projection (one MXU matmul, 128-lane-dense output) ----
    qkv = jnp.dot(x, w_ref[0:D, :], preferred_element_type=jnp.float32) + p_ref[0:1, :]
    q = qkv[:, 0:D]                    # (N, D)
    k = qkv[:, D:2 * D]
    v = qkv[:, 2 * D:3 * D]

    # ---------------- multi-head attention, all heads batched into one einsum pair ----
    # Layout work only (lane slices / reshapes / concat): batch index ordering is [h, b],
    # matching the pre-tiled additive bias built in the wrapper.
    def split_heads(t):                # (N, D) -> (H*B, S, dk)
        return jnp.concatenate(
            [t[:, h * dk:(h + 1) * dk].reshape(B, S, dk) for h in range(H)], axis=0)

    qh = split_heads(q)
    kh = split_heads(k)
    vh = split_heads(v)

    s = jnp.einsum('bqd,bkd->bqk', qh, kh,
                   preferred_element_type=jnp.float32) * scale        # (H*B, S, S)
    # Additive -1e9 bias (precomputed in the wrapper) is numerically equivalent to the
    # reference's where(mask==0, -1e9, score) after max-subtraction: masked probs
    # underflow to 0 in both formulations.
    s = s + bias_ref[...]

    m = jnp.max(s, axis=-1, keepdims=True)
    e = jnp.exp(s - m)
    # exact reciprocal (EUP); approx=True was flagged as marginal vs the 1e-4 tolerance
    p = e * pl.reciprocal(jnp.sum(e, axis=-1, keepdims=True), approx=False)

    ctx = jnp.einsum('bqk,bkd->bqd', p, vh,
                     preferred_element_type=jnp.float32)               # (H*B, S, dk)

    # merge heads back to (N, D) (lane concat), then ONE full-depth Wo matmul (K = D)
    ctx2 = jnp.concatenate(
        [ctx[h * B:(h + 1) * B].reshape(N, dk) for h in range(H)], axis=1)   # (N, D)
    attn_out = jnp.dot(ctx2, w_ref[D:2 * D, 0:D],
                       preferred_element_type=jnp.float32) + p_ref[1:2, 0:D]

    # residual + LayerNorm (dropout == identity)
    x1 = layer_norm(x + attn_out)

    # ---------------- position-wise feed-forward ----------------
    h1 = jnp.maximum(
        jnp.dot(x1, w_ref[2 * D:3 * D, 0:DFF],
                preferred_element_type=jnp.float32) + p_ref[4:5, 0:DFF], 0.0)
    ffn_out = jnp.dot(h1, w_ref[3 * D:3 * D + DFF, 0:D],
                      preferred_element_type=jnp.float32) + p_ref[5:6, 0:D]

    # residual + LayerNorm (same shared `self.norm` params, dropout == identity)
    o_ref[...] = layer_norm(x1 + ffn_out).astype(o_ref.dtype)


def encoder_layer(x, mask, params):
    B, S, D = x.shape
    (wq, bq, wk, bk, wv, bv, wo, bo, gamma, beta, w1, b1, w2, b2) = params

    def pad_cols(a):
        return jnp.pad(a, ((0, 0), (0, LANES - a.shape[1])))

    # --- weight slab: [Wqkv ; Wo ; W1 ; W2] stacked on sublanes, lane-padded to 128 ---
    wqkv = jnp.concatenate([wq, wk, wv], axis=1)                  # (D, 3D)
    w_slab = jnp.concatenate([pad_cols(wqkv),                     # rows 0   : D
                              pad_cols(wo),                       # rows D   : 2D
                              pad_cols(w1),                       # rows 2D  : 3D
                              pad_cols(w2)], axis=0)              # rows 3D  : 3D+D_FF
    # --- parameter-row slab: one (8, 128) vreg holding all (1, .) vectors ---
    bqkv = jnp.concatenate([bq, bk, bv], axis=1)                  # (1, 3D)
    p_slab = jnp.concatenate([pad_cols(bqkv),                     # row 0: bqkv
                              pad_cols(bo),                       # row 1: bo
                              pad_cols(gamma),                    # row 2: gamma
                              pad_cols(beta),                     # row 3: beta
                              pad_cols(b1),                       # row 4: b1
                              pad_cols(b2),                       # row 5: b2
                              jnp.zeros((2, LANES), jnp.float32)], axis=0)   # (8, 128)

    # mask -> additive bias once, in the wrapper; pre-tiled per head ([h, b] ordering
    # to match split_heads in the kernel)
    bias = jnp.where(mask == 0.0, -1e9, 0.0).astype(jnp.float32)  # (B, S, S)
    bias_hb = jnp.tile(bias, (NUM_HEADS, 1, 1))                   # (H*B, S, S)

    x2d = x.reshape(B * S, D)

    out = pl.pallas_call(
        encoder_layer_kernel,
        out_shape=jax.ShapeDtypeStruct((B * S, D), x.dtype),
        # gridless: single step, everything resident in VMEM (footprint ~100 KiB)
    )(x2d, bias_hb, w_slab, p_slab)

    return out.reshape(B, S, D)


def reference_encoder_layer(x, mask, params):
    (wq, bq, wk, bk, wv, bv, wo, bo, gamma, beta, w1, b1, w2, b2) = params
    B, S, D = x.shape
    dk = D // NUM_HEADS

    def layer_norm(v):
        mean = jnp.mean(v, axis=-1, keepdims=True)
        var = jnp.mean((v - mean) ** 2, axis=-1, keepdims=True)
        return (v - mean) / jnp.sqrt(var + EPS) * gamma[0] + beta[0]

    q = x @ wq + bq[0]
    k = x @ wk + bk[0]
    v = x @ wv + bv[0]
    q = q.reshape(B, S, NUM_HEADS, dk).transpose(0, 2, 1, 3)
    k = k.reshape(B, S, NUM_HEADS, dk).transpose(0, 2, 1, 3)
    v = v.reshape(B, S, NUM_HEADS, dk).transpose(0, 2, 1, 3)
    scores = jnp.einsum('bhqd,bhkd->bhqk', q, k) / jnp.sqrt(dk)
    scores = jnp.where(mask[:, None, :, :] == 0, -1e9, scores)
    attn = jax.nn.softmax(scores, axis=-1)
    out = jnp.einsum('bhqk,bhkd->bhqd', attn, v)
    out = out.transpose(0, 2, 1, 3).reshape(B, S, D)
    attn_out = out @ wo + bo[0]

    x1 = layer_norm(x + attn_out)
    h1 = jax.nn.relu(x1 @ w1 + b1[0])
    ffn_out = h1 @ w2 + b2[0]
    return layer_norm(x1 + ffn_out)


def init_params(key):
    ks = jax.random.split(key, 8)
    scale = 0.02
    wq = scale * jax.random.normal(ks[0], (D_MODEL, D_MODEL), jnp.float32)
    wk = scale * jax.random.normal(ks[1], (D_MODEL, D_MODEL), jnp.float32)
    wv = scale * jax.random.normal(ks[2], (D_MODEL, D_MODEL), jnp.float32)
    wo = scale * jax.random.normal(ks[3], (D_MODEL, D_MODEL), jnp.float32)
    bq = jnp.zeros((1, D_MODEL), jnp.float32)
    bk = jnp.zeros((1, D_MODEL), jnp.float32)
    bv = jnp.zeros((1, D_MODEL), jnp.float32)
    bo = jnp.zeros((1, D_MODEL), jnp.float32)
    gamma = jnp.ones((1, D_MODEL), jnp.float32)
    beta = jnp.zeros((1, D_MODEL), jnp.float32)
    w1 = scale * jax.random.normal(ks[4], (D_MODEL, D_FF), jnp.float32)
    b1 = 0.01 * jnp.ones((1, D_FF), jnp.float32)
    w2 = scale * jax.random.normal(ks[5], (D_FF, D_MODEL), jnp.float32)
    b2 = 0.01 * jnp.ones((1, D_MODEL), jnp.float32)
    return (wq, bq, wk, bk, wv, bv, wo, bo, gamma, beta, w1, b1, w2, b2)


if __name__ == "__main__":
    key = jax.random.PRNGKey(0)
    k_x, k_p = jax.random.split(key)

    x = jax.random.normal(k_x, (BATCH, SEQ, D_MODEL), jnp.float32)

    # padding-style mask: batch 0 keeps all positions, batch 1 masks the last 2 keys
    mask = jnp.ones((BATCH, SEQ, SEQ), jnp.float32)
    mask = mask.at[1, :, SEQ - 2:].set(0.0)

    params = init_params(k_p)

    out = encoder_layer(x, mask, params)
    out = jax.block_until_ready(out)

    ref = reference_encoder_layer(x, mask, params)
    assert out.shape == (BATCH, SEQ, D_MODEL)
    assert jnp.allclose(out, ref, atol=1e-4, rtol=1e-4), "mismatch vs pure-JAX reference"

    print("KERNEL_OK")
</pallas_src>

<mosaic_0001>
module attributes {stable_mosaic.version = 11 : i64} {
  func.func @encoder_layer_kernel(%arg0: memref<16x32xf32, #tpu.memory_space<vmem>>, %arg1: memref<8x8x8xf32, #tpu.memory_space<vmem>>, %arg2: memref<160x128xf32, #tpu.memory_space<vmem>>, %arg3: memref<8x128xf32, #tpu.memory_space<vmem>>, %arg4: memref<16x32xf32, #tpu.memory_space<vmem>>) attributes {dimension_semantics = [], scalar_prefetch = 0 : i64, scratch_operands = 0 : i64, tpu.core_type = #tpu.core_type<tc>} {
    %c0 = arith.constant 0 : index
    %c0_0 = arith.constant 0 : index
    %0 = vector.load %arg0[%c0, %c0_0] : memref<16x32xf32, #tpu.memory_space<vmem>>, vector<16x32xf32>
    %c2 = arith.constant 2 : index
    %c0_1 = arith.constant 0 : index
    %1 = vector.load %arg3[%c2, %c0_1] : memref<8x128xf32, #tpu.memory_space<vmem>>, vector<1x32xf32>
    %c3 = arith.constant 3 : index
    %c0_2 = arith.constant 0 : index
    %2 = vector.load %arg3[%c3, %c0_2] : memref<8x128xf32, #tpu.memory_space<vmem>>, vector<1x32xf32>
    %c0_3 = arith.constant 0 : index
    %c0_4 = arith.constant 0 : index
    %3 = vector.load %arg2[%c0_3, %c0_4] : memref<160x128xf32, #tpu.memory_space<vmem>>, vector<32x128xf32>
    %cst = arith.constant dense<0.000000e+00> : vector<16x128xf32>
    %4 = tpu.matmul %0, %3, %cst {dimension_numbers = #tpu.dot_dimension_numbers<[1], [0], [0], [1], [0, 0, 1, 1], [], []>} : vector<16x32xf32>, vector<32x128xf32>, vector<16x128xf32> -> vector<16x128xf32>
    %c0_5 = arith.constant 0 : index
    %c0_6 = arith.constant 0 : index
    %5 = vector.load %arg3[%c0_5, %c0_6] : memref<8x128xf32, #tpu.memory_space<vmem>>, vector<1x128xf32>
    %6 = vector.broadcast %5 : vector<1x128xf32> to vector<16x128xf32>
    %7 = arith.addf %4, %6 : vector<16x128xf32>
    %8 = vector.extract_strided_slice %7 {offsets = [0, 0], sizes = [16, 32], strides = [1, 1]} : vector<16x128xf32> to vector<16x32xf32>
    %9 = vector.extract_strided_slice %7 {offsets = [0, 32], sizes = [16, 32], strides = [1, 1]} : vector<16x128xf32> to vector<16x32xf32>
    %10 = vector.extract_strided_slice %7 {offsets = [0, 64], sizes = [16, 32], strides = [1, 1]} : vector<16x128xf32> to vector<16x32xf32>
    %11 = vector.extract_strided_slice %8 {offsets = [0, 0], sizes = [16, 8], strides = [1, 1]} : vector<16x32xf32> to vector<16x8xf32>
    %12 = vector.shape_cast %11 : vector<16x8xf32> to vector<2x8x8xf32>
    %13 = vector.extract_strided_slice %8 {offsets = [0, 8], sizes = [16, 8], strides = [1, 1]} : vector<16x32xf32> to vector<16x8xf32>
    %14 = vector.shape_cast %13 : vector<16x8xf32> to vector<2x8x8xf32>
    %15 = vector.extract_strided_slice %8 {offsets = [0, 16], sizes = [16, 8], strides = [1, 1]} : vector<16x32xf32> to vector<16x8xf32>
    %16 = vector.shape_cast %15 : vector<16x8xf32> to vector<2x8x8xf32>
    %17 = vector.extract_strided_slice %8 {offsets = [0, 24], sizes = [16, 8], strides = [1, 1]} : vector<16x32xf32> to vector<16x8xf32>
    %18 = vector.shape_cast %17 : vector<16x8xf32> to vector<2x8x8xf32>
    %19 = tpu.concatenate %12, %14, %16, %18 in 0 : vector<2x8x8xf32>, vector<2x8x8xf32>, vector<2x8x8xf32>, vector<2x8x8xf32> -> vector<8x8x8xf32>
    %20 = vector.extract_strided_slice %9 {offsets = [0, 0], sizes = [16, 8], strides = [1, 1]} : vector<16x32xf32> to vector<16x8xf32>
    %21 = vector.shape_cast %20 : vector<16x8xf32> to vector<2x8x8xf32>
    %22 = vector.extract_strided_slice %9 {offsets = [0, 8], sizes = [16, 8], strides = [1, 1]} : vector<16x32xf32> to vector<16x8xf32>
    %23 = vector.shape_cast %22 : vector<16x8xf32> to vector<2x8x8xf32>
    %24 = vector.extract_strided_slice %9 {offsets = [0, 16], sizes = [16, 8], strides = [1, 1]} : vector<16x32xf32> to vector<16x8xf32>
    %25 = vector.shape_cast %24 : vector<16x8xf32> to vector<2x8x8xf32>
    %26 = vector.extract_strided_slice %9 {offsets = [0, 24], sizes = [16, 8], strides = [1, 1]} : vector<16x32xf32> to vector<16x8xf32>
    %27 = vector.shape_cast %26 : vector<16x8xf32> to vector<2x8x8xf32>
    %28 = tpu.concatenate %21, %23, %25, %27 in 0 : vector<2x8x8xf32>, vector<2x8x8xf32>, vector<2x8x8xf32>, vector<2x8x8xf32> -> vector<8x8x8xf32>
    %29 = vector.extract_strided_slice %10 {offsets = [0, 0], sizes = [16, 8], strides = [1, 1]} : vector<16x32xf32> to vector<16x8xf32>
    %30 = vector.shape_cast %29 : vector<16x8xf32> to vector<2x8x8xf32>
    %31 = vector.extract_strided_slice %10 {offsets = [0, 8], sizes = [16, 8], strides = [1, 1]} : vector<16x32xf32> to vector<16x8xf32>
    %32 = vector.shape_cast %31 : vector<16x8xf32> to vector<2x8x8xf32>
    %33 = vector.extract_strided_slice %10 {offsets = [0, 16], sizes = [16, 8], strides = [1, 1]} : vector<16x32xf32> to vector<16x8xf32>
    %34 = vector.shape_cast %33 : vector<16x8xf32> to vector<2x8x8xf32>
    %35 = vector.extract_strided_slice %10 {offsets = [0, 24], sizes = [16, 8], strides = [1, 1]} : vector<16x32xf32> to vector<16x8xf32>
    %36 = vector.shape_cast %35 : vector<16x8xf32> to vector<2x8x8xf32>
    %37 = tpu.concatenate %30, %32, %34, %36 in 0 : vector<2x8x8xf32>, vector<2x8x8xf32>, vector<2x8x8xf32>, vector<2x8x8xf32> -> vector<8x8x8xf32>
    "tpu.trace_start"() <{level = 10 : i32, message = "bqd,bkd->bqk"}> : () -> ()
    %cst_7 = arith.constant dense<0.000000e+00> : vector<8x8x8xf32>
    %38 = tpu.matmul %19, %28, %cst_7 {dimension_numbers = #tpu.dot_dimension_numbers<[2], [2], [1], [1], [0, 0, 0, 1, 1, 1], [0], [0]>} : vector<8x8x8xf32>, vector<8x8x8xf32>, vector<8x8x8xf32> -> vector<8x8x8xf32>
    "tpu.trace_stop"() : () -> ()
    %cst_8 = arith.constant 0.353553385 : f32
    %39 = vector.broadcast %cst_8 : f32 to vector<8x8x8xf32>
    %40 = arith.mulf %38, %39 : vector<8x8x8xf32>
    %c0_9 = arith.constant 0 : index
    %c0_10 = arith.constant 0 : index
    %c0_11 = arith.constant 0 : index
    %41 = vector.load %arg1[%c0_9, %c0_10, %c0_11] : memref<8x8x8xf32, #tpu.memory_space<vmem>>, vector<8x8x8xf32>
    %42 = arith.addf %40, %41 : vector<8x8x8xf32>
    %cst_12 = arith.constant dense<0xFF800000> : vector<8x8xf32>
    %43 = vector.multi_reduction <maximumf>, %42, %cst_12 [2] : vector<8x8x8xf32> to vector<8x8xf32>
    %44 = vector.shape_cast %43 : vector<8x8xf32> to vector<8x8x1xf32>
    %45 = vector.broadcast %44 : vector<8x8x1xf32> to vector<8x8x8xf32>
    %46 = arith.subf %42, %45 : vector<8x8x8xf32>
    %47 = math.exp %46 : vector<8x8x8xf32>
    %cst_13 = arith.constant dense<0.000000e+00> : vector<8x8xf32>
    %48 = vector.multi_reduction <add>, %47, %cst_13 [2] : vector<8x8x8xf32> to vector<8x8xf32>
    %49 = vector.shape_cast %48 : vector<8x8xf32> to vector<8x8x1xf32>
    %50 = tpu.reciprocal %49 : vector<8x8x1xf32> -> vector<8x8x1xf32>
    %51 = vector.broadcast %50 : vector<8x8x1xf32> to vector<8x8x8xf32>
    %52 = arith.mulf %47, %51 : vector<8x8x8xf32>
    "tpu.trace_start"() <{level = 10 : i32, message = "bqk,bkd->bqd"}> : () -> ()
    %cst_14 = arith.constant dense<0.000000e+00> : vector<8x8x8xf32>
    %53 = tpu.matmul %52, %37, %cst_14 {dimension_numbers = #tpu.dot_dimension_numbers<[2], [1], [1], [2], [0, 0, 0, 1, 1, 2], [0], [0]>} : vector<8x8x8xf32>, vector<8x8x8xf32>, vector<8x8x8xf32> -> vector<8x8x8xf32>
    "tpu.trace_stop"() : () -> ()
    %54 = vector.extract_strided_slice %53 {offsets = [0, 0, 0], sizes = [2, 8, 8], strides = [1, 1, 1]} : vector<8x8x8xf32> to vector<2x8x8xf32>
    %55 = vector.shape_cast %54 : vector<2x8x8xf32> to vector<16x8xf32>
    %56 = vector.extract_strided_slice %53 {offsets = [2, 0, 0], sizes = [2, 8, 8], strides = [1, 1, 1]} : vector<8x8x8xf32> to vector<2x8x8xf32>
    %57 = vector.shape_cast %56 : vector<2x8x8xf32> to vector<16x8xf32>
    %58 = vector.extract_strided_slice %53 {offsets = [4, 0, 0], sizes = [2, 8, 8], strides = [1, 1, 1]} : vector<8x8x8xf32> to vector<2x8x8xf32>
    %59 = vector.shape_cast %58 : vector<2x8x8xf32> to vector<16x8xf32>
    %60 = vector.extract_strided_slice %53 {offsets = [6, 0, 0], sizes = [2, 8, 8], strides = [1, 1, 1]} : vector<8x8x8xf32> to vector<2x8x8xf32>
    %61 = vector.shape_cast %60 : vector<2x8x8xf32> to vector<16x8xf32>
    %62 = tpu.concatenate %55, %57, %59, %61 in 1 : vector<16x8xf32>, vector<16x8xf32>, vector<16x8xf32>, vector<16x8xf32> -> vector<16x32xf32>
    %c32 = arith.constant 32 : index
    %c0_15 = arith.constant 0 : index
    %63 = vector.load %arg2[%c32, %c0_15] : memref<160x128xf32, #tpu.memory_space<vmem>>, vector<32x32xf32>
    %cst_16 = arith.constant dense<0.000000e+00> : vector<16x32xf32>
    %64 = tpu.matmul %62, %63, %cst_16 {dimension_numbers = #tpu.dot_dimension_numbers<[1], [0], [0], [1], [0, 0, 1, 1], [], []>} : vector<16x32xf32>, vector<32x32xf32>, vector<16x32xf32> -> vector<16x32xf32>
    %c1 = arith.constant 1 : index
    %c0_17 = arith.constant 0 : index
    %65 = vector.load %arg3[%c1, %c0_17] : memref<8x128xf32, #tpu.memory_space<vmem>>, vector<1x32xf32>
    %66 = vector.broadcast %65 : vector<1x32xf32> to vector<16x32xf32>
    %67 = arith.addf %64, %66 : vector<16x32xf32>
    %68 = arith.addf %0, %67 : vector<16x32xf32>
    %cst_18 = arith.constant dense<0.000000e+00> : vector<16xf32>
    %69 = vector.multi_reduction <add>, %68, %cst_18 [1] : vector<16x32xf32> to vector<16xf32>
    %70 = vector.shape_cast %69 : vector<16xf32> to vector<16x1xf32>
    %cst_19 = arith.constant 3.200000e+01 : f32
    %71 = vector.broadcast %cst_19 : f32 to vector<16x1xf32>
    %72 = arith.divf %70, %71 : vector<16x1xf32>
    %73 = vector.broadcast %72 : vector<16x1xf32> to vector<16x32xf32>
    %74 = arith.subf %68, %73 : vector<16x32xf32>
    %75 = arith.mulf %74, %74 : vector<16x32xf32>
    %cst_20 = arith.constant dense<0.000000e+00> : vector<16xf32>
    %76 = vector.multi_reduction <add>, %75, %cst_20 [1] : vector<16x32xf32> to vector<16xf32>
    %77 = vector.shape_cast %76 : vector<16xf32> to vector<16x1xf32>
    %cst_21 = arith.constant 3.200000e+01 : f32
    %78 = vector.broadcast %cst_21 : f32 to vector<16x1xf32>
    %79 = arith.divf %77, %78 : vector<16x1xf32>
    %80 = vector.broadcast %72 : vector<16x1xf32> to vector<16x32xf32>
    %81 = arith.subf %68, %80 : vector<16x32xf32>
    %cst_22 = arith.constant 9.99999997E-7 : f32
    %82 = vector.broadcast %cst_22 : f32 to vector<16x1xf32>
    %83 = arith.addf %79, %82 : vector<16x1xf32>
    %84 = math.rsqrt %83 : vector<16x1xf32>
    %85 = vector.broadcast %84 : vector<16x1xf32> to vector<16x32xf32>
    %86 = arith.mulf %81, %85 : vector<16x32xf32>
    %87 = vector.broadcast %1 : vector<1x32xf32> to vector<16x32xf32>
    %88 = arith.mulf %86, %87 : vector<16x32xf32>
    %89 = vector.broadcast %2 : vector<1x32xf32> to vector<16x32xf32>
    %90 = arith.addf %88, %89 : vector<16x32xf32>
    %c64 = arith.constant 64 : index
    %c0_23 = arith.constant 0 : index
    %91 = vector.load %arg2[%c64, %c0_23] : memref<160x128xf32, #tpu.memory_space<vmem>>, vector<32x64xf32>
    %cst_24 = arith.constant dense<0.000000e+00> : vector<16x64xf32>
    %92 = tpu.matmul %90, %91, %cst_24 {dimension_numbers = #tpu.dot_dimension_numbers<[1], [0], [0], [1], [0, 0, 1, 1], [], []>} : vector<16x32xf32>, vector<32x64xf32>, vector<16x64xf32> -> vector<16x64xf32>
    %c4 = arith.constant 4 : index
    %c0_25 = arith.constant 0 : index
    %93 = vector.load %arg3[%c4, %c0_25] : memref<8x128xf32, #tpu.memory_space<vmem>>, vector<1x64xf32>
    %94 = vector.broadcast %93 : vector<1x64xf32> to vector<16x64xf32>
    %95 = arith.addf %92, %94 : vector<16x64xf32>
    %cst_26 = arith.constant 0.000000e+00 : f32
    %96 = vector.broadcast %cst_26 : f32 to vector<16x64xf32>
    %97 = arith.maximumf %95, %96 : vector<16x64xf32>
    %c96 = arith.constant 96 : index
    %c0_27 = arith.constant 0 : index
    %98 = vector.load %arg2[%c96, %c0_27] : memref<160x128xf32, #tpu.memory_space<vmem>>, vector<64x32xf32>
    %cst_28 = arith.constant dense<0.000000e+00> : vector<16x32xf32>
    %99 = tpu.matmul %97, %98, %cst_28 {dimension_numbers = #tpu.dot_dimension_numbers<[1], [0], [0], [1], [0, 0, 1, 1], [], []>} : vector<16x64xf32>, vector<64x32xf32>, vector<16x32xf32> -> vector<16x32xf32>
    %c5 = arith.constant 5 : index
    %c0_29 = arith.constant 0 : index
    %100 = vector.load %arg3[%c5, %c0_29] : memref<8x128xf32, #tpu.memory_space<vmem>>, vector<1x32xf32>
    %101 = vector.broadcast %100 : vector<1x32xf32> to vector<16x32xf32>
    %102 = arith.addf %99, %101 : vector<16x32xf32>
    %103 = arith.addf %90, %102 : vector<16x32xf32>
    %cst_30 = arith.constant dense<0.000000e+00> : vector<16xf32>
    %104 = vector.multi_reduction <add>, %103, %cst_30 [1] : vector<16x32xf32> to vector<16xf32>
    %105 = vector.shape_cast %104 : vector<16xf32> to vector<16x1xf32>
    %cst_31 = arith.constant 3.200000e+01 : f32
    %106 = vector.broadcast %cst_31 : f32 to vector<16x1xf32>
    %107 = arith.divf %105, %106 : vector<16x1xf32>
    %108 = vector.broadcast %107 : vector<16x1xf32> to vector<16x32xf32>
    %109 = arith.subf %103, %108 : vector<16x32xf32>
    %110 = arith.mulf %109, %109 : vector<16x32xf32>
    %cst_32 = arith.constant dense<0.000000e+00> : vector<16xf32>
    %111 = vector.multi_reduction <add>, %110, %cst_32 [1] : vector<16x32xf32> to vector<16xf32>
    %112 = vector.shape_cast %111 : vector<16xf32> to vector<16x1xf32>
    %cst_33 = arith.constant 3.200000e+01 : f32
    %113 = vector.broadcast %cst_33 : f32 to vector<16x1xf32>
    %114 = arith.divf %112, %113 : vector<16x1xf32>
    %115 = vector.broadcast %107 : vector<16x1xf32> to vector<16x32xf32>
    %116 = arith.subf %103, %115 : vector<16x32xf32>
    %cst_34 = arith.constant 9.99999997E-7 : f32
    %117 = vector.broadcast %cst_34 : f32 to vector<16x1xf32>
    %118 = arith.addf %114, %117 : vector<16x1xf32>
    %119 = math.rsqrt %118 : vector<16x1xf32>
    %120 = vector.broadcast %119 : vector<16x1xf32> to vector<16x32xf32>
    %121 = arith.mulf %116, %120 : vector<16x32xf32>
    %122 = vector.broadcast %1 : vector<1x32xf32> to vector<16x32xf32>
    %123 = arith.mulf %121, %122 : vector<16x32xf32>
    %124 = vector.broadcast %2 : vector<1x32xf32> to vector<16x32xf32>
    %125 = arith.addf %123, %124 : vector<16x32xf32>
    %c0_35 = arith.constant 0 : index
    %c0_36 = arith.constant 0 : index
    %126 = vector.load %arg4[%c0_35, %c0_36] : memref<16x32xf32, #tpu.memory_space<vmem>>, vector<16x32xf32>
    tpu.vector_store %arg4[%c0_35, %c0_36], %125 {strides = array<i32>} : memref<16x32xf32, #tpu.memory_space<vmem>>, vector<16x32xf32>,
    return
  }
}

</mosaic_0001>

<llo_original>
// kernel: tpu_custom_call.1
$region0: #{tpu_custom_call.1}
  #allocation0 [shape = 'u32[]', space=smem, size = 0x4, offset = 0x4, fixed_abs, tag = 'smem constant byte address 0x4 - core index']
  #allocation1 [shape = 'u32[144,128]{1,0:T(1,128)}', space=vmem, size = 0x12000, scoped, tag = 'internal scratch']
  %s0 = inlined_call_operand.hbm [shape: f32[16,32], index: 0, kind: input, shape index: {}]
  %s1 = inlined_call_operand.hbm [shape: f32[8,8,8], index: 1, kind: input, shape index: {}]
  %s2 = inlined_call_operand.hbm [shape: f32[160,128], index: 2, kind: input, shape index: {}]
  %s3 = inlined_call_operand.hbm [shape: f32[8,128], index: 3, kind: input, shape index: {}]
  %s4 = inlined_call_operand.hbm [shape: f32[16,32], index: 4, kind: output, shape index: {}]
  %s5 = sld [smem:[#allocation0]]
  $region42: #{tpu_custom_call.1} parent=0
    _
  %s7 = ssub.s32 1, %s5
  %s8 = scalar_select 0, %s7, %s5
  $region1: #{tpu_custom_call.1} parent=0
    #allocation2 [shape = 'u8[8192]{0}', space=vmem, size = 0x2000, scoped, tag = 'input window, operand 0, single buffered']
    #allocation3 [shape = 's32[1]{0}', space=sflag, size = 0x4, scoped, tag = 'scoped memory for tpu_custom_call.1']
    #allocation4 [shape = 's32[1]{0}', space=sflag, size = 0x4, scoped, tag = 'scoped memory for tpu_custom_call.1']
    #allocation5 [shape = 'u8[32768]{0}', space=vmem, size = 0x8000, scoped, tag = 'input window, operand 1, single buffered']
    #allocation6 [shape = 's32[1]{0}', space=sflag, size = 0x4, scoped, tag = 'scoped memory for tpu_custom_call.1']
    #allocation7 [shape = 'u8[81920]{0}', space=vmem, size = 0x14000, scoped, tag = 'input window, operand 2, single buffered']
    #allocation8 [shape = 'u8[4096]{0}', space=vmem, size = 0x1000, scoped, tag = 'input window, operand 3, single buffered']
    #allocation9 [shape = 's32[1]{0}', space=sflag, size = 0x4, scoped, tag = 'scoped memory for tpu_custom_call.1']
    #allocation10 [shape = 'u8[8192]{0}', space=vmem, size = 0x2000, scoped, tag = 'output window, operand 0, single buffered']
    %9 = vsyncpa [#allocation3], 0
    %10 = vsyncpa [#allocation6], 0
    %11 = vsyncpa [#allocation9], 0
    %12 = vsyncpa [#allocation4], 0
    // Predicated region
    $region2: #{tpu_custom_call.1} parent=1 // pred_check
      _
    $region3: #{tpu_custom_call.1} parent=1 // pred_check_branch
      %14 = sbr.rel (0) target = $region5
    $region4: #{tpu_custom_call.1} parent=1 // pred_region
      %s16 = ssub.s32 256, 256
      %17 = vsyncadd [#allocation3], %s16
      %s18 = sshll.u32 [#allocation2], 4
      %s19 = int_to_ptr.vmem [resolvable:$true] %s18
      %24 = dma.hbm_to_vmem [thread:$0]  %s0, 256, %s19, [#allocation3], 128, 128, 8
    $region5: #{tpu_custom_call.1} parent=1 // pred_fallthru
      _
    // Predicated region
    $region6: #{tpu_custom_call.1} parent=1 // pred_check
      _
    $region7: #{tpu_custom_call.1} parent=1 // pred_check_branch
      %26 = sbr.rel (0) target = $region9
    $region8: #{tpu_custom_call.1} parent=1 // pred_region
      %s28 = ssub.s32 1024, 1024
      %29 = vsyncadd [#allocation6], %s28
      %s30 = sshll.u32 [#allocation5], 4
      %s31 = int_to_ptr.vmem [resolvable:$true] %s30
      %36 = dma.hbm_to_vmem [thread:$0]  %s1, 1024, %s31, [#allocation6], 128, 128, 8
    $region9: #{tpu_custom_call.1} parent=1 // pred_fallthru
      _
    // Predicated region
    $region10: #{tpu_custom_call.1} parent=1 // pred_check
      _
    $region11: #{tpu_custom_call.1} parent=1 // pred_check_branch
      %38 = sbr.rel (0) target = $region13
    $region12: #{tpu_custom_call.1} parent=1 // pred_region
      %s40 = ssub.s32 2560, 2560
      %41 = vsyncadd [#allocation6], %s40
      %s42 = sshll.u32 [#allocation7], 4
      %s43 = int_to_ptr.vmem [resolvable:$true] %s42
      %48 = dma.hbm_to_vmem [thread:$0]  %s2, 2560, %s43, [#allocation6], 128, 128, 8
    $region13: #{tpu_custom_call.1} parent=1 // pred_fallthru
      _
    // Predicated region
    $region14: #{tpu_custom_call.1} parent=1 // pred_check
      _
    $region15: #{tpu_custom_call.1} parent=1 // pred_check_branch
      %50 = sbr.rel (0) target = $region17
    $region16: #{tpu_custom_call.1} parent=1 // pred_region
      %s52 = ssub.s32 128, 128
      %53 = vsyncadd [#allocation9], %s52
      %s55 = sshll.u32 [#allocation8], 4
      %s56 = int_to_ptr.vmem [resolvable:$true] %s55
      %58 = dma.hbm_to_vmem [thread:$0]  %s3, 128, %s56, [#allocation9]
    $region17: #{tpu_custom_call.1} parent=1 // pred_fallthru
      _
    // Predicated region
    $region18: #{tpu_custom_call.1} parent=1 // pred_check
      _
    $region19: #{tpu_custom_call.1} parent=1 // pred_check_branch
      %60 = sbr.rel (0) target = $region21
    $region20: #{tpu_custom_call.1} parent=1 // pred_region
      %61 = dma.done [#allocation3], 256
    $region21: #{tpu_custom_call.1} parent=1 // pred_fallthru
      _
    // Predicated region
    $region22: #{tpu_custom_call.1} parent=1 // pred_check
      _
    $region23: #{tpu_custom_call.1} parent=1 // pred_check_branch
      %63 = sbr.rel (0) target = $region25
    $region24: #{tpu_custom_call.1} parent=1 // pred_region
      %64 = dma.done [#allocation6], 1024
    $region25: #{tpu_custom_call.1} parent=1 // pred_fallthru
      _
    // Predicated region
    $region26: #{tpu_custom_call.1} parent=1 // pred_check
      _
    $region27: #{tpu_custom_call.1} parent=1 // pred_check_branch
      %66 = sbr.rel (0) target = $region29
    $region28: #{tpu_custom_call.1} parent=1 // pred_region
      %67 = dma.done [#allocation6], 2560
    $region29: #{tpu_custom_call.1} parent=1 // pred_fallthru
      _
    // Predicated region
    $region30: #{tpu_custom_call.1} parent=1 // pred_check
      _
    $region31: #{tpu_custom_call.1} parent=1 // pred_check_branch
      %69 = sbr.rel (0) target = $region33
    $region32: #{tpu_custom_call.1} parent=1 // pred_region
      %70 = dma.done [#allocation9], 128
    $region33: #{tpu_custom_call.1} parent=1 // pred_fallthru
      _
    %v71 = vld [vmem:[#allocation2] sm:$0xff]
    %v72 = vld [vmem:[#allocation2 + $0x8] sm:$0xff]
    %v73 = vld [vmem:[#allocation8 + $0x2] sm:$0x1]
    %v74 = vld [vmem:[#allocation8 + $0x3] sm:$0x1]
    %v75 = vld [vmem:[#allocation7] sm:$0xff]
    %v76 = vld [vmem:[#allocation7 + $0x8] sm:$0xff]
    %v77 = vld [vmem:[#allocation7 + $0x10] sm:$0xff]
    %v78 = vld [vmem:[#allocation7 + $0x18] sm:$0xff]
    %v79 = vld [vmem:[#allocation8] sm:$0x1]
    %v80 = vlaneseq
    %v81 = vshrl.u32 %v80, 7
    %v82 = vsub.s32 0, %v81
    %v83 = vrot.slane %v79, %v82
    %vm84 = vcmask 261120
    %v86 = vsel %vm84, %v71, 0
    %v89 = vsel %vm84, %v72, 0
    %91 = vmatprep.subr.mxu0 0.0
    %92 = vmatpush1.msra.mxu0 0.0
    %93 = vmatprep.subr.mxu0 0.0
    %94 = vmatpush1.msra.mxu0 0.0
    %95 = vmatprep.subr.mxu0 0.0
    %96 = vmatpush1.msra.mxu0 0.0
    %97 = vmatprep.subr.mxu0 0.0
    %98 = vmatpush1.msra.mxu0 0.0
    %99 = vmatprep.subr.mxu0 0.0
    %100 = vmatpush1.msra.mxu0 0.0
    %101 = vmatprep.subr.mxu0 0.0
    %102 = vmatpush1.msra.mxu0 0.0
    %103 = vmatprep.subr.mxu0 0.0
    %104 = vmatpush1.msra.mxu0 0.0
    %105 = vmatprep.subr.mxu0 0.0
    %106 = vmatpush1.msra.mxu0 0.0
    %107 = vmatprep.subr.mxu0 0.0
    %108 = vmatpush1.msra.mxu0 0.0
    %109 = vmatprep.subr.mxu0 0.0
    %110 = vmatpush1.msra.mxu0 0.0
    %111 = vmatprep.subr.mxu0 0.0
    %112 = vmatpush1.msra.mxu0 0.0
    %113 = vmatprep.subr.mxu0 0.0
    %114 = vmatpush1.msra.mxu0 0.0
    %115 = vmatprep.subr.mxu0 0.0
    %116 = vmatpush1.msra.mxu0 %v78
    %117 = vmatprep.subr.mxu0 0.0
    %118 = vmatpush1.msra.mxu0 %v77
    %119 = vmatprep.subr.mxu0 0.0
    %120 = vmatpush1.msra.mxu0 %v76
    %121 = vmatprep.subr.mxu0 0.0
    %122 = vmatpush1.msra.mxu0 %v75
    %123 = vmatprep.subr.mxu0 0.0
    %124 = vmatpush2.msra.mxu0 0.0
    %125 = vmatprep.subr.mxu0 0.0
    %126 = vmatpush2.msra.mxu0 0.0
    %127 = vmatprep.subr.mxu0 0.0
    %128 = vmatpush2.msra.mxu0 0.0
    %129 = vmatprep.subr.mxu0 0.0
    %130 = vmatpush2.msra.mxu0 0.0
    %131 = vmatprep.subr.mxu0 0.0
    %132 = vmatpush2.msra.mxu0 0.0
    %133 = vmatprep.subr.mxu0 0.0
    %134 = vmatpush2.msra.mxu0 0.0
    %135 = vmatprep.subr.mxu0 0.0
    %136 = vmatpush2.msra.mxu0 0.0
    %137 = vmatprep.subr.mxu0 0.0
    %138 = vmatpush2.msra.mxu0 0.0
    %139 = vmatprep.subr.mxu0 0.0
    %140 = vmatpush2.msra.mxu0 0.0
    %141 = vmatprep.subr.mxu0 0.0
    %142 = vmatpush2.msra.mxu0 0.0
    %143 = vmatprep.subr.mxu0 0.0
    %144 = vmatpush2.msra.mxu0 0.0
    %145 = vmatprep.subr.mxu0 0.0
    %146 = vmatpush2.msra.mxu0 0.0
    %147 = vmatprep.subr.mxu0 0.0
    %148 = vmatpush2.msra.mxu0 0.0
    %149 = vmatprep.subr.mxu0 0.0
    %150 = vmatpush2.msra.mxu0 0.0
    %151 = vmatprep.subr.mxu0 0.0
    %152 = vmatpush2.msra.mxu0 0.0
    %153 = vmatprep.subr.mxu0 0.0
    %154 = vmatpush2.msra.mxu0 0.0
    %155 = vmatprep.mubr.f32.mxu0 0.0
    %156 = vmatmul.mubr.f32.gmra.mxu0 %v86
    %v157 = vpop.f32.mrf.mxu0
    %v158 = vadd.f32 %v83, %v157
    %v159 = vpop.f32.mrf.mxu0
    %160 = vmatprep.mubr.f32.mxu0 0.0
    %161 = vmatmul.mubr.f32.gmra.mxu0 %v89
    %v162 = vpop.f32.mrf.mxu0
    %v163 = vadd.f32 %v83, %v162
    %v164 = vpop.f32.mrf.mxu0
    %165 = vdwg.mxu0
    %168 = vrot.lane.b32.xlu0 %v158, 120
    %v169 = vpop.permute.xlu0 %168
    %170 = vrot.lane.b32.xlu0 %v163, 120
    %v171 = vpop.permute.xlu0 %170
    %172 = vrot.lane.b32.xlu0 %v158, 112
    %v173 = vpop.permute.xlu0 %172
    %174 = vrot.lane.b32.xlu0 %v163, 112
    %v175 = vpop.permute.xlu0 %174
    %176 = vrot.lane.b32.xlu0 %v158, 104
    %v177 = vpop.permute.xlu0 %176
    %178 = vrot.lane.b32.xlu0 %v163, 104
    %v179 = vpop.permute.xlu0 %178
    %180 = vrot.lane.b32.xlu0 %v158, 96
    %v181 = vpop.permute.xlu0 %180
    %vm182 = vcmask 64512
    %v183 = vsel %vm182, %v158, 0
    %v185 = vsel %vm182, %v181, 0
    %187 = vmatprep.subr.mxu0 0.0
    %188 = vmatpush1.xpose.msra.mxu0 0.0
    %189 = vmatprep.subr.mxu0 0.0
    %190 = vmatpush1.xpose.msra.mxu0 0.0
    %191 = vmatprep.subr.mxu0 0.0
    %192 = vmatpush1.xpose.msra.mxu0 0.0
    %193 = vmatprep.subr.mxu0 0.0
    %194 = vmatpush1.xpose.msra.mxu0 0.0
    %195 = vmatprep.subr.mxu0 0.0
    %196 = vmatpush1.xpose.msra.mxu0 0.0
    %197 = vmatprep.subr.mxu0 0.0
    %198 = vmatpush1.xpose.msra.mxu0 0.0
    %199 = vmatprep.subr.mxu0 0.0
    %200 = vmatpush1.xpose.msra.mxu0 0.0
    %201 = vmatprep.subr.mxu0 0.0
    %202 = vmatpush1.xpose.msra.mxu0 0.0
    %203 = vmatprep.subr.mxu0 0.0
    %204 = vmatpush1.xpose.msra.mxu0 0.0
    %205 = vmatprep.subr.mxu0 0.0
    %206 = vmatpush1.xpose.msra.mxu0 0.0
    %207 = vmatprep.subr.mxu0 0.0
    %208 = vmatpush1.xpose.msra.mxu0 0.0
    %209 = vmatprep.subr.mxu0 0.0
    %210 = vmatpush1.xpose.msra.mxu0 0.0
    %211 = vmatprep.subr.mxu0 0.0
    %212 = vmatpush1.xpose.msra.mxu0 0.0
    %213 = vmatprep.subr.mxu0 0.0
    %214 = vmatpush1.xpose.msra.mxu0 0.0
    %215 = vmatprep.subr.mxu0 0.0
    %216 = vmatpush1.xpose.msra.mxu0 0.0
    %217 = vmatprep.subr.mxu0 0.0
    %218 = vmatpush1.xpose.msra.mxu0 %v185
    %219 = vmatprep.subr.mxu0 0.0
    %220 = vmatpush2.xpose.msra.mxu0 0.0
    %221 = vmatprep.subr.mxu0 0.0
    %222 = vmatpush2.xpose.msra.mxu0 0.0
    %223 = vmatprep.subr.mxu0 0.0
    %224 = vmatpush2.xpose.msra.mxu0 0.0
    %225 = vmatprep.subr.mxu0 0.0
    %226 = vmatpush2.xpose.msra.mxu0 0.0
    %227 = vmatprep.subr.mxu0 0.0
    %228 = vmatpush2.xpose.msra.mxu0 0.0
    %229 = vmatprep.subr.mxu0 0.0
    %230 = vmatpush2.xpose.msra.mxu0 0.0
    %231 = vmatprep.subr.mxu0 0.0
    %232 = vmatpush2.xpose.msra.mxu0 0.0
    %233 = vmatprep.subr.mxu0 0.0
    %234 = vmatpush2.xpose.msra.mxu0 0.0
    %235 = vmatprep.subr.mxu0 0.0
    %236 = vmatpush2.xpose.msra.mxu0 0.0
    %237 = vmatprep.subr.mxu0 0.0
    %238 = vmatpush2.xpose.msra.mxu0 0.0
    %239 = vmatprep.subr.mxu0 0.0
    %240 = vmatpush2.xpose.msra.mxu0 0.0
    %241 = vmatprep.subr.mxu0 0.0
    %242 = vmatpush2.xpose.msra.mxu0 0.0
    %243 = vmatprep.subr.mxu0 0.0
    %244 = vmatpush2.xpose.msra.mxu0 0.0
    %245 = vmatprep.subr.mxu0 0.0
    %246 = vmatpush2.xpose.msra.mxu0 0.0
    %247 = vmatprep.subr.mxu0 0.0
    %248 = vmatpush2.xpose.msra.mxu0 0.0
    %249 = vmatprep.subr.mxu0 0.0
    %250 = vmatpush2.xpose.msra.mxu0 0.0
    %251 = vmatprep.mubr.f32.mxu0 0.0
    %252 = vmatmul.mubr.f32.gmra.mxu0 %v183
    %v253 = vpop.f32.mrf.mxu0
    %v254 = vadd.f32 0.0, %v253
    %v255 = vpop.f32.mrf.mxu0
    %256 = vdwg.mxu0
    %257 = vrot.lane.b32.xlu0 %v163, 96
    %v258 = vpop.permute.xlu0 %257
    %v259 = vsel %vm182, %v163, 0
    %v261 = vsel %vm182, %v258, 0
    %263 = vmatprep.subr.mxu0 0.0
    %264 = vmatpush1.xpose.msra.mxu0 0.0
    %265 = vmatprep.subr.mxu0 0.0
    %266 = vmatpush1.xpose.msra.mxu0 0.0
    %267 = vmatprep.subr.mxu0 0.0
    %268 = vmatpush1.xpose.msra.mxu0 0.0
    %269 = vmatprep.subr.mxu0 0.0
    %270 = vmatpush1.xpose.msra.mxu0 0.0
    %271 = vmatprep.subr.mxu0 0.0
    %272 = vmatpush1.xpose.msra.mxu0 0.0
    %273 = vmatprep.subr.mxu0 0.0
    %274 = vmatpush1.xpose.msra.mxu0 0.0
    %275 = vmatprep.subr.mxu0 0.0
    %276 = vmatpush1.xpose.msra.mxu0 0.0
    %277 = vmatprep.subr.mxu0 0.0
    %278 = vmatpush1.xpose.msra.mxu0 0.0
    %279 = vmatprep.subr.mxu0 0.0
    %280 = vmatpush1.xpose.msra.mxu0 0.0
    %281 = vmatprep.subr.mxu0 0.0
    %282 = vmatpush1.xpose.msra.mxu0 0.0
    %283 = vmatprep.subr.mxu0 0.0
    %284 = vmatpush1.xpose.msra.mxu0 0.0
    %285 = vmatprep.subr.mxu0 0.0
    %286 = vmatpush1.xpose.msra.mxu0 0.0
    %287 = vmatprep.subr.mxu0 0.0
    %288 = vmatpush1.xpose.msra.mxu0 0.0
    %289 = vmatprep.subr.mxu0 0.0
    %290 = vmatpush1.xpose.msra.mxu0 0.0
    %291 = vmatprep.subr.mxu0 0.0
    %292 = vmatpush1.xpose.msra.mxu0 0.0
    %293 = vmatprep.subr.mxu0 0.0
    %294 = vmatpush1.xpose.msra.mxu0 %v261
    %295 = vmatprep.subr.mxu0 0.0
    %296 = vmatpush2.xpose.msra.mxu0 0.0
    %297 = vmatprep.subr.mxu0 0.0
    %298 = vmatpush2.xpose.msra.mxu0 0.0
    %299 = vmatprep.subr.mxu0 0.0
    %300 = vmatpush2.xpose.msra.mxu0 0.0
    %301 = vmatprep.subr.mxu0 0.0
    %302 = vmatpush2.xpose.msra.mxu0 0.0
    %303 = vmatprep.subr.mxu0 0.0
    %304 = vmatpush2.xpose.msra.mxu0 0.0
    %305 = vmatprep.subr.mxu0 0.0
    %306 = vmatpush2.xpose.msra.mxu0 0.0
    %307 = vmatprep.subr.mxu0 0.0
    %308 = vmatpush2.xpose.msra.mxu0 0.0
    %309 = vmatprep.subr.mxu0 0.0
    %310 = vmatpush2.xpose.msra.mxu0 0.0
    %311 = vmatprep.subr.mxu0 0.0
    %312 = vmatpush2.xpose.msra.mxu0 0.0
    %313 = vmatprep.subr.mxu0 0.0
    %314 = vmatpush2.xpose.msra.mxu0 0.0
    %315 = vmatprep.subr.mxu0 0.0
    %316 = vmatpush2.xpose.msra.mxu0 0.0
    %317 = vmatprep.subr.mxu0 0.0
    %318 = vmatpush2.xpose.msra.mxu0 0.0
    %319 = vmatprep.subr.mxu0 0.0
    %320 = vmatpush2.xpose.msra.mxu0 0.0
    %321 = vmatprep.subr.mxu0 0.0
    %322 = vmatpush2.xpose.msra.mxu0 0.0
    %323 = vmatprep.subr.mxu0 0.0
    %324 = vmatpush2.xpose.msra.mxu0 0.0
    %325 = vmatprep.subr.mxu0 0.0
    %326 = vmatpush2.xpose.msra.mxu0 0.0
    %327 = vmatprep.mubr.f32.mxu0 0.0
    %328 = vmatmul.mubr.f32.gmra.mxu0 %v259
    %v329 = vpop.f32.mrf.mxu0
    %v330 = vadd.f32 0.0, %v329
    %v331 = vpop.f32.mrf.mxu0
    %332 = vdwg.mxu0
    %333 = vrot.lane.b32.xlu0 %v169, 96
    %v334 = vpop.permute.xlu0 %333
    %v335 = vsel %vm182, %v169, 0
    %v337 = vsel %vm182, %v334, 0
    %339 = vmatprep.subr.mxu0 0.0
    %340 = vmatpush1.xpose.msra.mxu0 0.0
    %341 = vmatprep.subr.mxu0 0.0
    %342 = vmatpush1.xpose.msra.mxu0 0.0
    %343 = vmatprep.subr.mxu0 0.0
    %344 = vmatpush1.xpose.msra.mxu0 0.0
    %345 = vmatprep.subr.mxu0 0.0
    %346 = vmatpush1.xpose.msra.mxu0 0.0
    %347 = vmatprep.subr.mxu0 0.0
    %348 = vmatpush1.xpose.msra.mxu0 0.0
    %349 = vmatprep.subr.mxu0 0.0
    %350 = vmatpush1.xpose.msra.mxu0 0.0
    %351 = vmatprep.subr.mxu0 0.0
    %352 = vmatpush1.xpose.msra.mxu0 0.0
    %353 = vmatprep.subr.mxu0 0.0
    %354 = vmatpush1.xpose.msra.mxu0 0.0
    %355 = vmatprep.subr.mxu0 0.0
    %356 = vmatpush1.xpose.msra.mxu0 0.0
    %357 = vmatprep.subr.mxu0 0.0
    %358 = vmatpush1.xpose.msra.mxu0 0.0
    %359 = vmatprep.subr.mxu0 0.0
    %360 = vmatpush1.xpose.msra.mxu0 0.0
    %361 = vmatprep.subr.mxu0 0.0
    %362 = vmatpush1.xpose.msra.mxu0 0.0
    %363 = vmatprep.subr.mxu0 0.0
    %364 = vmatpush1.xpose.msra.mxu0 0.0
    %365 = vmatprep.subr.mxu0 0.0
    %366 = vmatpush1.xpose.msra.mxu0 0.0
    %367 = vmatprep.subr.mxu0 0.0
    %368 = vmatpush1.xpose.msra.mxu0 0.0
    %369 = vmatprep.subr.mxu0 0.0
    %370 = vmatpush1.xpose.msra.mxu0 %v337
    %371 = vmatprep.subr.mxu0 0.0
    %372 = vmatpush2.xpose.msra.mxu0 0.0
    %373 = vmatprep.subr.mxu0 0.0
    %374 = vmatpush2.xpose.msra.mxu0 0.0
    %375 = vmatprep.subr.mxu0 0.0
    %376 = vmatpush2.xpose.msra.mxu0 0.0
    %377 = vmatprep.subr.mxu0 0.0
    %378 = vmatpush2.xpose.msra.mxu0 0.0
    %379 = vmatprep.subr.mxu0 0.0
    %380 = vmatpush2.xpose.msra.mxu0 0.0
    %381 = vmatprep.subr.mxu0 0.0
    %382 = vmatpush2.xpose.msra.mxu0 0.0
    %383 = vmatprep.subr.mxu0 0.0
    %384 = vmatpush2.xpose.msra.mxu0 0.0
    %385 = vmatprep.subr.mxu0 0.0
    %386 = vmatpush2.xpose.msra.mxu0 0.0
    %387 = vmatprep.subr.mxu0 0.0
    %388 = vmatpush2.xpose.msra.mxu0 0.0
    %389 = vmatprep.subr.mxu0 0.0
    %390 = vmatpush2.xpose.msra.mxu0 0.0
    %391 = vmatprep.subr.mxu0 0.0
    %392 = vmatpush2.xpose.msra.mxu0 0.0
    %393 = vmatprep.subr.mxu0 0.0
    %394 = vmatpush2.xpose.msra.mxu0 0.0
    %395 = vmatprep.subr.mxu0 0.0
    %396 = vmatpush2.xpose.msra.mxu0 0.0
    %397 = vmatprep.subr.mxu0 0.0
    %398 = vmatpush2.xpose.msra.mxu0 0.0
    %399 = vmatprep.subr.mxu0 0.0
    %400 = vmatpush2.xpose.msra.mxu0 0.0
    %401 = vmatprep.subr.mxu0 0.0
    %402 = vmatpush2.xpose.msra.mxu0 0.0
    %403 = vmatprep.mubr.f32.mxu0 0.0
    %404 = vmatmul.mubr.f32.gmra.mxu0 %v335
    %v405 = vpop.f32.mrf.mxu0
    %v406 = vadd.f32 0.0, %v405
    %v407 = vpop.f32.mrf.mxu0
    %408 = vdwg.mxu0
    %409 = vrot.lane.b32.xlu0 %v171, 96
    %v410 = vpop.permute.xlu0 %409
    %v411 = vsel %vm182, %v171, 0
    %v413 = vsel %vm182, %v410, 0
    %415 = vmatprep.subr.mxu0 0.0
    %416 = vmatpush1.xpose.msra.mxu0 0.0
    %417 = vmatprep.subr.mxu0 0.0
    %418 = vmatpush1.xpose.msra.mxu0 0.0
    %419 = vmatprep.subr.mxu0 0.0
    %420 = vmatpush1.xpose.msra.mxu0 0.0
    %421 = vmatprep.subr.mxu0 0.0
    %422 = vmatpush1.xpose.msra.mxu0 0.0
    %423 = vmatprep.subr.mxu0 0.0
    %424 = vmatpush1.xpose.msra.mxu0 0.0
    %425 = vmatprep.subr.mxu0 0.0
    %426 = vmatpush1.xpose.msra.mxu0 0.0
    %427 = vmatprep.subr.mxu0 0.0
    %428 = vmatpush1.xpose.msra.mxu0 0.0
    %429 = vmatprep.subr.mxu0 0.0
    %430 = vmatpush1.xpose.msra.mxu0 0.0
    %431 = vmatprep.subr.mxu0 0.0
    %432 = vmatpush1.xpose.msra.mxu0 0.0
    %433 = vmatprep.subr.mxu0 0.0
    %434 = vmatpush1.xpose.msra.mxu0 0.0
    %435 = vmatprep.subr.mxu0 0.0
    %436 = vmatpush1.xpose.msra.mxu0 0.0
    %437 = vmatprep.subr.mxu0 0.0
    %438 = vmatpush1.xpose.msra.mxu0 0.0
    %439 = vmatprep.subr.mxu0 0.0
    %440 = vmatpush1.xpose.msra.mxu0 0.0
    %441 = vmatprep.subr.mxu0 0.0
    %442 = vmatpush1.xpose.msra.mxu0 0.0
    %443 = vmatprep.subr.mxu0 0.0
    %444 = vmatpush1.xpose.msra.mxu0 0.0
    %445 = vmatprep.subr.mxu0 0.0
    %446 = vmatpush1.xpose.msra.mxu0 %v413
    %447 = vmatprep.subr.mxu0 0.0
    %448 = vmatpush2.xpose.msra.mxu0 0.0
    %449 = vmatprep.subr.mxu0 0.0
    %450 = vmatpush2.xpose.msra.mxu0 0.0
    %451 = vmatprep.subr.mxu0 0.0
    %452 = vmatpush2.xpose.msra.mxu0 0.0
    %453 = vmatprep.subr.mxu0 0.0
    %454 = vmatpush2.xpose.msra.mxu0 0.0
    %455 = vmatprep.subr.mxu0 0.0
    %456 = vmatpush2.xpose.msra.mxu0 0.0
    %457 = vmatprep.subr.mxu0 0.0
    %458 = vmatpush2.xpose.msra.mxu0 0.0
    %459 = vmatprep.subr.mxu0 0.0
    %460 = vmatpush2.xpose.msra.mxu0 0.0
    %461 = vmatprep.subr.mxu0 0.0
    %462 = vmatpush2.xpose.msra.mxu0 0.0
    %463 = vmatprep.subr.mxu0 0.0
    %464 = vmatpush2.xpose.msra.mxu0 0.0
    %465 = vmatprep.subr.mxu0 0.0
    %466 = vmatpush2.xpose.msra.mxu0 0.0
    %467 = vmatprep.subr.mxu0 0.0
    %468 = vmatpush2.xpose.msra.mxu0 0.0
    %469 = vmatprep.subr.mxu0 0.0
    %470 = vmatpush2.xpose.msra.mxu0 0.0
    %471 = vmatprep.subr.mxu0 0.0
    %472 = vmatpush2.xpose.msra.mxu0 0.0
    %473 = vmatprep.subr.mxu0 0.0
    %474 = vmatpush2.xpose.msra.mxu0 0.0
    %475 = vmatprep.subr.mxu0 0.0
    %476 = vmatpush2.xpose.msra.mxu0 0.0
    %477 = vmatprep.subr.mxu0 0.0
    %478 = vmatpush2.xpose.msra.mxu0 0.0
    %479 = vmatprep.mubr.f32.mxu0 0.0
    %480 = vmatmul.mubr.f32.gmra.mxu0 %v411
    %v481 = vpop.f32.mrf.mxu0
    %v482 = vadd.f32 0.0, %v481
    %v483 = vpop.f32.mrf.mxu0
    %484 = vdwg.mxu0
    %485 = vrot.lane.b32.xlu0 %v173, 96
    %v486 = vpop.permute.xlu0 %485
    %v487 = vsel %vm182, %v173, 0
    %v489 = vsel %vm182, %v486, 0
    %491 = vmatprep.subr.mxu0 0.0
    %492 = vmatpush1.xpose.msra.mxu0 0.0
    %493 = vmatprep.subr.mxu0 0.0
    %494 = vmatpush1.xpose.msra.mxu0 0.0
    %495 = vmatprep.subr.mxu0 0.0
    %496 = vmatpush1.xpose.msra.mxu0 0.0
    %497 = vmatprep.subr.mxu0 0.0
    %498 = vmatpush1.xpose.msra.mxu0 0.0
    %499 = vmatprep.subr.mxu0 0.0
    %500 = vmatpush1.xpose.msra.mxu0 0.0
    %501 = vmatprep.subr.mxu0 0.0
    %502 = vmatpush1.xpose.msra.mxu0 0.0
    %503 = vmatprep.subr.mxu0 0.0
    %504 = vmatpush1.xpose.msra.mxu0 0.0
    %505 = vmatprep.subr.mxu0 0.0
    %506 = vmatpush1.xpose.msra.mxu0 0.0
    %507 = vmatprep.subr.mxu0 0.0
    %508 = vmatpush1.xpose.msra.mxu0 0.0
    %509 = vmatprep.subr.mxu0 0.0
    %510 = vmatpush1.xpose.msra.mxu0 0.0
    %511 = vmatprep.subr.mxu0 0.0
    %512 = vmatpush1.xpose.msra.mxu0 0.0
    %513 = vmatprep.subr.mxu0 0.0
    %514 = vmatpush1.xpose.msra.mxu0 0.0
    %515 = vmatprep.subr.mxu0 0.0
    %516 = vmatpush1.xpose.msra.mxu0 0.0
    %517 = vmatprep.subr.mxu0 0.0
    %518 = vmatpush1.xpose.msra.mxu0 0.0
    %519 = vmatprep.subr.mxu0 0.0
    %520 = vmatpush1.xpose.msra.mxu0 0.0
    %521 = vmatprep.subr.mxu0 0.0
    %522 = vmatpush1.xpose.msra.mxu0 %v489
    %523 = vmatprep.subr.mxu0 0.0
    %524 = vmatpush2.xpose.msra.mxu0 0.0
    %525 = vmatprep.subr.mxu0 0.0
    %526 = vmatpush2.xpose.msra.mxu0 0.0
    %527 = vmatprep.subr.mxu0 0.0
    %528 = vmatpush2.xpose.msra.mxu0 0.0
    %529 = vmatprep.subr.mxu0 0.0
    %530 = vmatpush2.xpose.msra.mxu0 0.0
    %531 = vmatprep.subr.mxu0 0.0
    %532 = vmatpush2.xpose.msra.mxu0 0.0
    %533 = vmatprep.subr.mxu0 0.0
    %534 = vmatpush2.xpose.msra.mxu0 0.0
    %535 = vmatprep.subr.mxu0 0.0
    %536 = vmatpush2.xpose.msra.mxu0 0.0
    %537 = vmatprep.subr.mxu0 0.0
    %538 = vmatpush2.xpose.msra.mxu0 0.0
    %539 = vmatprep.subr.mxu0 0.0
    %540 = vmatpush2.xpose.msra.mxu0 0.0
    %541 = vmatprep.subr.mxu0 0.0
    %542 = vmatpush2.xpose.msra.mxu0 0.0
    %543 = vmatprep.subr.mxu0 0.0
    %544 = vmatpush2.xpose.msra.mxu0 0.0
    %545 = vmatprep.subr.mxu0 0.0
    %546 = vmatpush2.xpose.msra.mxu0 0.0
    %547 = vmatprep.subr.mxu0 0.0
    %548 = vmatpush2.xpose.msra.mxu0 0.0
    %549 = vmatprep.subr.mxu0 0.0
    %550 = vmatpush2.xpose.msra.mxu0 0.0
    %551 = vmatprep.subr.mxu0 0.0
    %552 = vmatpush2.xpose.msra.mxu0 0.0
    %553 = vmatprep.subr.mxu0 0.0
    %554 = vmatpush2.xpose.msra.mxu0 0.0
    %555 = vmatprep.mubr.f32.mxu0 0.0
    %556 = vmatmul.mubr.f32.gmra.mxu0 %v487
    %v557 = vpop.f32.mrf.mxu0
    %v558 = vadd.f32 0.0, %v557
    %v559 = vpop.f32.mrf.mxu0
    %560 = vdwg.mxu0
    %561 = vrot.lane.b32.xlu0 %v175, 96
    %v562 = vpop.permute.xlu0 %561
    %v563 = vsel %vm182, %v175, 0
    %v565 = vsel %vm182, %v562, 0
    %567 = vmatprep.subr.mxu0 0.0
    %568 = vmatpush1.xpose.msra.mxu0 0.0
    %569 = vmatprep.subr.mxu0 0.0
    %570 = vmatpush1.xpose.msra.mxu0 0.0
    %571 = vmatprep.subr.mxu0 0.0
    %572 = vmatpush1.xpose.msra.mxu0 0.0
    %573 = vmatprep.subr.mxu0 0.0
    %574 = vmatpush1.xpose.msra.mxu0 0.0
    %575 = vmatprep.subr.mxu0 0.0
    %576 = vmatpush1.xpose.msra.mxu0 0.0
    %577 = vmatprep.subr.mxu0 0.0
    %578 = vmatpush1.xpose.msra.mxu0 0.0
    %579 = vmatprep.subr.mxu0 0.0
    %580 = vmatpush1.xpose.msra.mxu0 0.0
    %581 = vmatprep.subr.mxu0 0.0
    %582 = vmatpush1.xpose.msra.mxu0 0.0
    %583 = vmatprep.subr.mxu0 0.0
    %584 = vmatpush1.xpose.msra.mxu0 0.0
    %585 = vmatprep.subr.mxu0 0.0
    %586 = vmatpush1.xpose.msra.mxu0 0.0
    %587 = vmatprep.subr.mxu0 0.0
    %588 = vmatpush1.xpose.msra.mxu0 0.0
    %589 = vmatprep.subr.mxu0 0.0
    %590 = vmatpush1.xpose.msra.mxu0 0.0
    %591 = vmatprep.subr.mxu0 0.0
    %592 = vmatpush1.xpose.msra.mxu0 0.0
    %593 = vmatprep.subr.mxu0 0.0
    %594 = vmatpush1.xpose.msra.mxu0 0.0
    %595 = vmatprep.subr.mxu0 0.0
    %596 = vmatpush1.xpose.msra.mxu0 0.0
    %597 = vmatprep.subr.mxu0 0.0
    %598 = vmatpush1.xpose.msra.mxu0 %v565
    %599 = vmatprep.subr.mxu0 0.0
    %600 = vmatpush2.xpose.msra.mxu0 0.0
    %601 = vmatprep.subr.mxu0 0.0
    %602 = vmatpush2.xpose.msra.mxu0 0.0
    %603 = vmatprep.subr.mxu0 0.0
    %604 = vmatpush2.xpose.msra.mxu0 0.0
    %605 = vmatprep.subr.mxu0 0.0
    %606 = vmatpush2.xpose.msra.mxu0 0.0
    %607 = vmatprep.subr.mxu0 0.0
    %608 = vmatpush2.xpose.msra.mxu0 0.0
    %609 = vmatprep.subr.mxu0 0.0
    %610 = vmatpush2.xpose.msra.mxu0 0.0
    %611 = vmatprep.subr.mxu0 0.0
    %612 = vmatpush2.xpose.msra.mxu0 0.0
    %613 = vmatprep.subr.mxu0 0.0
    %614 = vmatpush2.xpose.msra.mxu0 0.0
    %615 = vmatprep.subr.mxu0 0.0
    %616 = vmatpush2.xpose.msra.mxu0 0.0
    %617 = vmatprep.subr.mxu0 0.0
    %618 = vmatpush2.xpose.msra.mxu0 0.0
    %619 = vmatprep.subr.mxu0 0.0
    %620 = vmatpush2.xpose.msra.mxu0 0.0
    %621 = vmatprep.subr.mxu0 0.0
    %622 = vmatpush2.xpose.msra.mxu0 0.0
    %623 = vmatprep.subr.mxu0 0.0
    %624 = vmatpush2.xpose.msra.mxu0 0.0
    %625 = vmatprep.subr.mxu0 0.0
    %626 = vmatpush2.xpose.msra.mxu0 0.0
    %627 = vmatprep.subr.mxu0 0.0
    %628 = vmatpush2.xpose.msra.mxu0 0.0
    %629 = vmatprep.subr.mxu0 0.0
    %630 = vmatpush2.xpose.msra.mxu0 0.0
    %631 = vmatprep.mubr.f32.mxu0 0.0
    %632 = vmatmul.mubr.f32.gmra.mxu0 %v563
    %v633 = vpop.f32.mrf.mxu0
    %v634 = vadd.f32 0.0, %v633
    %v635 = vpop.f32.mrf.mxu0
    %636 = vdwg.mxu0
    %637 = vrot.lane.b32.xlu0 %v177, 96
    %v638 = vpop.permute.xlu0 %637
    %v639 = vsel %vm182, %v177, 0
    %v641 = vsel %vm182, %v638, 0
    %643 = vmatprep.subr.mxu0 0.0
    %644 = vmatpush1.xpose.msra.mxu0 0.0
    %645 = vmatprep.subr.mxu0 0.0
    %646 = vmatpush1.xpose.msra.mxu0 0.0
    %647 = vmatprep.subr.mxu0 0.0
    %648 = vmatpush1.xpose.msra.mxu0 0.0
    %649 = vmatprep.subr.mxu0 0.0
    %650 = vmatpush1.xpose.msra.mxu0 0.0
    %651 = vmatprep.subr.mxu0 0.0
    %652 = vmatpush1.xpose.msra.mxu0 0.0
    %653 = vmatprep.subr.mxu0 0.0
    %654 = vmatpush1.xpose.msra.mxu0 0.0
    %655 = vmatprep.subr.mxu0 0.0
    %656 = vmatpush1.xpose.msra.mxu0 0.0
    %657 = vmatprep.subr.mxu0 0.0
    %658 = vmatpush1.xpose.msra.mxu0 0.0
    %659 = vmatprep.subr.mxu0 0.0
    %660 = vmatpush1.xpose.msra.mxu0 0.0
    %661 = vmatprep.subr.mxu0 0.0
    %662 = vmatpush1.xpose.msra.mxu0 0.0
    %663 = vmatprep.subr.mxu0 0.0
    %664 = vmatpush1.xpose.msra.mxu0 0.0
    %665 = vmatprep.subr.mxu0 0.0
    %666 = vmatpush1.xpose.msra.mxu0 0.0
    %667 = vmatprep.subr.mxu0 0.0
    %668 = vmatpush1.xpose.msra.mxu0 0.0
    %669 = vmatprep.subr.mxu0 0.0
    %670 = vmatpush1.xpose.msra.mxu0 0.0
    %671 = vmatprep.subr.mxu0 0.0
    %672 = vmatpush1.xpose.msra.mxu0 0.0
    %673 = vmatprep.subr.mxu0 0.0
    %674 = vmatpush1.xpose.msra.mxu0 %v641
    %675 = vmatprep.subr.mxu0 0.0
    %676 = vmatpush2.xpose.msra.mxu0 0.0
    %677 = vmatprep.subr.mxu0 0.0
    %678 = vmatpush2.xpose.msra.mxu0 0.0
    %679 = vmatprep.subr.mxu0 0.0
    %680 = vmatpush2.xpose.msra.mxu0 0.0
    %681 = vmatprep.subr.mxu0 0.0
    %682 = vmatpush2.xpose.msra.mxu0 0.0
    %683 = vmatprep.subr.mxu0 0.0
    %684 = vmatpush2.xpose.msra.mxu0 0.0
    %685 = vmatprep.subr.mxu0 0.0
    %686 = vmatpush2.xpose.msra.mxu0 0.0
    %687 = vmatprep.subr.mxu0 0.0
    %688 = vmatpush2.xpose.msra.mxu0 0.0
    %689 = vmatprep.subr.mxu0 0.0
    %690 = vmatpush2.xpose.msra.mxu0 0.0
    %691 = vmatprep.subr.mxu0 0.0
    %692 = vmatpush2.xpose.msra.mxu0 0.0
    %693 = vmatprep.subr.mxu0 0.0
    %694 = vmatpush2.xpose.msra.mxu0 0.0
    %695 = vmatprep.subr.mxu0 0.0
    %696 = vmatpush2.xpose.msra.mxu0 0.0
    %697 = vmatprep.subr.mxu0 0.0
    %698 = vmatpush2.xpose.msra.mxu0 0.0
    %699 = vmatprep.subr.mxu0 0.0
    %700 = vmatpush2.xpose.msra.mxu0 0.0
    %701 = vmatprep.subr.mxu0 0.0
    %702 = vmatpush2.xpose.msra.mxu0 0.0
    %703 = vmatprep.subr.mxu0 0.0
    %704 = vmatpush2.xpose.msra.mxu0 0.0
    %705 = vmatprep.subr.mxu0 0.0
    %706 = vmatpush2.xpose.msra.mxu0 0.0
    %707 = vmatprep.mubr.f32.mxu0 0.0
    %708 = vmatmul.mubr.f32.gmra.mxu0 %v639
    %v709 = vpop.f32.mrf.mxu0
    %v710 = vadd.f32 0.0, %v709
    %v711 = vpop.f32.mrf.mxu0
    %712 = vdwg.mxu0
    %713 = vrot.lane.b32.xlu0 %v179, 96
    %v714 = vpop.permute.xlu0 %713
    %v715 = vsel %vm182, %v179, 0
    %v717 = vsel %vm182, %v714, 0
    %719 = vmatprep.subr.mxu0 0.0
    %720 = vmatpush1.xpose.msra.mxu0 0.0
    %721 = vmatprep.subr.mxu0 0.0
    %722 = vmatpush1.xpose.msra.mxu0 0.0
    %723 = vmatprep.subr.mxu0 0.0
    %724 = vmatpush1.xpose.msra.mxu0 0.0
    %725 = vmatprep.subr.mxu0 0.0
    %726 = vmatpush1.xpose.msra.mxu0 0.0
    %727 = vmatprep.subr.mxu0 0.0
    %728 = vmatpush1.xpose.msra.mxu0 0.0
    %729 = vmatprep.subr.mxu0 0.0
    %730 = vmatpush1.xpose.msra.mxu0 0.0
    %731 = vmatprep.subr.mxu0 0.0
    %732 = vmatpush1.xpose.msra.mxu0 0.0
    %733 = vmatprep.subr.mxu0 0.0
    %734 = vmatpush1.xpose.msra.mxu0 0.0
    %735 = vmatprep.subr.mxu0 0.0
    %736 = vmatpush1.xpose.msra.mxu0 0.0
    %737 = vmatprep.subr.mxu0 0.0
    %738 = vmatpush1.xpose.msra.mxu0 0.0
    %739 = vmatprep.subr.mxu0 0.0
    %740 = vmatpush1.xpose.msra.mxu0 0.0
    %741 = vmatprep.subr.mxu0 0.0
    %742 = vmatpush1.xpose.msra.mxu0 0.0
    %743 = vmatprep.subr.mxu0 0.0
    %744 = vmatpush1.xpose.msra.mxu0 0.0
    %745 = vmatprep.subr.mxu0 0.0
    %746 = vmatpush1.xpose.msra.mxu0 0.0
    %747 = vmatprep.subr.mxu0 0.0
    %748 = vmatpush1.xpose.msra.mxu0 0.0
    %749 = vmatprep.subr.mxu0 0.0
    %750 = vmatpush1.xpose.msra.mxu0 %v717
    %751 = vmatprep.subr.mxu0 0.0
    %752 = vmatpush2.xpose.msra.mxu0 0.0
    %753 = vmatprep.subr.mxu0 0.0
    %754 = vmatpush2.xpose.msra.mxu0 0.0
    %755 = vmatprep.subr.mxu0 0.0
    %756 = vmatpush2.xpose.msra.mxu0 0.0
    %757 = vmatprep.subr.mxu0 0.0
    %758 = vmatpush2.xpose.msra.mxu0 0.0
    %759 = vmatprep.subr.mxu0 0.0
    %760 = vmatpush2.xpose.msra.mxu0 0.0
    %761 = vmatprep.subr.mxu0 0.0
    %762 = vmatpush2.xpose.msra.mxu0 0.0
    %763 = vmatprep.subr.mxu0 0.0
    %764 = vmatpush2.xpose.msra.mxu0 0.0
    %765 = vmatprep.subr.mxu0 0.0
    %766 = vmatpush2.xpose.msra.mxu0 0.0
    %767 = vmatprep.subr.mxu0 0.0
    %768 = vmatpush2.xpose.msra.mxu0 0.0
    %769 = vmatprep.subr.mxu0 0.0
    %770 = vmatpush2.xpose.msra.mxu0 0.0
    %771 = vmatprep.subr.mxu0 0.0
    %772 = vmatpush2.xpose.msra.mxu0 0.0
    %773 = vmatprep.subr.mxu0 0.0
    %774 = vmatpush2.xpose.msra.mxu0 0.0
    %775 = vmatprep.subr.mxu0 0.0
    %776 = vmatpush2.xpose.msra.mxu0 0.0
    %777 = vmatprep.subr.mxu0 0.0
    %778 = vmatpush2.xpose.msra.mxu0 0.0
    %779 = vmatprep.subr.mxu0 0.0
    %780 = vmatpush2.xpose.msra.mxu0 0.0
    %781 = vmatprep.subr.mxu0 0.0
    %782 = vmatpush2.xpose.msra.mxu0 0.0
    %783 = vmatprep.mubr.f32.mxu0 0.0
    %784 = vmatmul.mubr.f32.gmra.mxu0 %v715
    %v785 = vpop.f32.mrf.mxu0
    %v786 = vadd.f32 0.0, %v785
    %v787 = vpop.f32.mrf.mxu0
    %788 = vdwg.mxu0
    %v789 = vmul.f32 %v254, 0.35355338
    %v790 = vmul.f32 %v330, 0.35355338
    %v791 = vmul.f32 %v406, 0.35355338
    %v792 = vmul.f32 %v482, 0.35355338
    %v793 = vmul.f32 %v558, 0.35355338
    %v794 = vmul.f32 %v634, 0.35355338
    %v795 = vmul.f32 %v710, 0.35355338
    %v796 = vmul.f32 %v786, 0.35355338
    %v797 = vld [vmem:[#allocation5] sm:$0xff]
    %v798 = vld [vmem:[#allocation5 + $0x8] sm:$0xff]
    %v799 = vld [vmem:[#allocation5 + $0x10] sm:$0xff]
    %v800 = vld [vmem:[#allocation5 + $0x18] sm:$0xff]
    %v801 = vld [vmem:[#allocation5 + $0x20] sm:$0xff]
    %v802 = vld [vmem:[#allocation5 + $0x28] sm:$0xff]
    %v803 = vld [vmem:[#allocation5 + $0x30] sm:$0xff]
    %v804 = vld [vmem:[#allocation5 + $0x38] sm:$0xff]
    %v805 = vadd.f32 %v789, %v797
    %v806 = vadd.f32 %v790, %v798
    %v807 = vadd.f32 %v791, %v799
    %v808 = vadd.f32 %v792, %v800
    %v809 = vadd.f32 %v793, %v801
    %v810 = vadd.f32 %v794, %v802
    %v811 = vadd.f32 %v795, %v803
    %v812 = vadd.f32 %v796, %v804
    %v813 = vsel %vm182, %v805, -inf
    %814 = vmax.xlane.f32.xlu0 %v813
    %v815 = vpop.xlane.xlu0 %814
    %v816 = vsel %vm182, %v806, -inf
    %817 = vmax.xlane.f32.xlu0 %v816
    %v818 = vpop.xlane.xlu0 %817
    %v819 = vsel %vm182, %v807, -inf
    %820 = vmax.xlane.f32.xlu0 %v819
    %v821 = vpop.xlane.xlu0 %820
    %v822 = vsel %vm182, %v808, -inf
    %823 = vmax.xlane.f32.xlu0 %v822
    %v824 = vpop.xlane.xlu0 %823
    %v825 = vsel %vm182, %v809, -inf
    %826 = vmax.xlane.f32.xlu0 %v825
    %v827 = vpop.xlane.xlu0 %826
    %v828 = vsel %vm182, %v810, -inf
    %829 = vmax.xlane.f32.xlu0 %v828
    %v830 = vpop.xlane.xlu0 %829
    %v831 = vsel %vm182, %v811, -inf
    %832 = vmax.xlane.f32.xlu0 %v831
    %v833 = vpop.xlane.xlu0 %832
    %v834 = vsel %vm182, %v812, -inf
    %835 = vmax.xlane.f32.xlu0 %v834
    %v836 = vpop.xlane.xlu0 %835
    %v837 = vsub.f32 %v805, %v815
    %v838 = vsub.f32 %v806, %v818
    %v839 = vsub.f32 %v807, %v821
    %v840 = vsub.f32 %v808, %v824
    %v841 = vsub.f32 %v809, %v827
    %v842 = vsub.f32 %v810, %v830
    %v843 = vsub.f32 %v811, %v833
    %v844 = vsub.f32 %v812, %v836
    %v845 = vmul.f32 %v837, 1.442695
    %v846 = vpow.pop %v845
    %v847 = vmul.f32 %v838, 1.442695
    %v848 = vpow.pop %v847
    %v849 = vmul.f32 %v839, 1.442695
    %v850 = vpow.pop %v849
    %v851 = vmul.f32 %v840, 1.442695
    %v852 = vpow.pop %v851
    %v853 = vmul.f32 %v841, 1.442695
    %v854 = vpow.pop %v853
    %v855 = vmul.f32 %v842, 1.442695
    %v856 = vpow.pop %v855
    %v857 = vmul.f32 %v843, 1.442695
    %v858 = vpow.pop %v857
    %v859 = vmul.f32 %v844, 1.442695
    %v860 = vpow.pop %v859
    %v861 = vsel %vm182, %v846, 0.0
    %862 = vadd.xlane.f32.xlu0 %v861
    %v863 = vpop.xlane.xlu0 %862
    %v864 = vsel %vm182, %v848, 0.0
    %865 = vadd.xlane.f32.xlu0 %v864
    %v866 = vpop.xlane.xlu0 %865
    %v867 = vsel %vm182, %v850, 0.0
    %868 = vadd.xlane.f32.xlu0 %v867
    %v869 = vpop.xlane.xlu0 %868
    %v870 = vsel %vm182, %v852, 0.0
    %871 = vadd.xlane.f32.xlu0 %v870
    %v872 = vpop.xlane.xlu0 %871
    %v873 = vsel %vm182, %v854, 0.0
    %874 = vadd.xlane.f32.xlu0 %v873
    %v875 = vpop.xlane.xlu0 %874
    %v876 = vsel %vm182, %v856, 0.0
    %877 = vadd.xlane.f32.xlu0 %v876
    %v878 = vpop.xlane.xlu0 %877
    %v879 = vsel %vm182, %v858, 0.0
    %880 = vadd.xlane.f32.xlu0 %v879
    %v881 = vpop.xlane.xlu0 %880
    %v882 = vsel %vm182, %v860, 0.0
    %883 = vadd.xlane.f32.xlu0 %v882
    %v884 = vpop.xlane.xlu0 %883
    %v885 = vrcp.pop %v863
    %v886 = vrcp.pop %v866
    %v887 = vrcp.pop %v869
    %v888 = vrcp.pop %v872
    %v889 = vrcp.pop %v875
    %v890 = vrcp.pop %v878
    %v891 = vrcp.pop %v881
    %v892 = vrcp.pop %v884
    %v893 = vmul.f32 %v846, %v885
    %v894 = vmul.f32 %v848, %v886
    %v895 = vmul.f32 %v850, %v887
    %v896 = vmul.f32 %v852, %v888
    %v897 = vmul.f32 %v854, %v889
    %v898 = vmul.f32 %v856, %v890
    %v899 = vmul.f32 %v858, %v891
    %v900 = vmul.f32 %v860, %v892
    %901 = vrot.lane.b32.xlu0 %v158, 64
    %v902 = vpop.permute.xlu0 %901
    %v905 = vsel %vm182, %v893, 0
    %907 = vmatprep.subr.mxu0 0.0
    %908 = vmatpush1.msra.mxu0 0.0
    %909 = vmatprep.subr.mxu0 0.0
    %910 = vmatpush1.msra.mxu0 0.0
    %911 = vmatprep.subr.mxu0 0.0
    %912 = vmatpush1.msra.mxu0 0.0
    %913 = vmatprep.subr.mxu0 0.0
    %914 = vmatpush1.msra.mxu0 0.0
    %915 = vmatprep.subr.mxu0 0.0
    %916 = vmatpush1.msra.mxu0 0.0
    %917 = vmatprep.subr.mxu0 0.0
    %918 = vmatpush1.msra.mxu0 0.0
    %919 = vmatprep.subr.mxu0 0.0
    %920 = vmatpush1.msra.mxu0 0.0
    %921 = vmatprep.subr.mxu0 0.0
    %922 = vmatpush1.msra.mxu0 0.0
    %923 = vmatprep.subr.mxu0 0.0
    %924 = vmatpush1.msra.mxu0 0.0
    %925 = vmatprep.subr.mxu0 0.0
    %926 = vmatpush1.msra.mxu0 0.0
    %927 = vmatprep.subr.mxu0 0.0
    %928 = vmatpush1.msra.mxu0 0.0
    %929 = vmatprep.subr.mxu0 0.0
    %930 = vmatpush1.msra.mxu0 0.0
    %931 = vmatprep.subr.mxu0 0.0
    %932 = vmatpush1.msra.mxu0 0.0
    %933 = vmatprep.subr.mxu0 0.0
    %934 = vmatpush1.msra.mxu0 0.0
    %935 = vmatprep.subr.mxu0 0.0
    %936 = vmatpush1.msra.mxu0 0.0
    %937 = vmatprep.subr.mxu0 0.0
    %938 = vmatpush1.msra.mxu0 %v902
    %939 = vmatprep.subr.mxu0 0.0
    %940 = vmatpush2.msra.mxu0 0.0
    %941 = vmatprep.subr.mxu0 0.0
    %942 = vmatpush2.msra.mxu0 0.0
    %943 = vmatprep.subr.mxu0 0.0
    %944 = vmatpush2.msra.mxu0 0.0
    %945 = vmatprep.subr.mxu0 0.0
    %946 = vmatpush2.msra.mxu0 0.0
    %947 = vmatprep.subr.mxu0 0.0
    %948 = vmatpush2.msra.mxu0 0.0
    %949 = vmatprep.subr.mxu0 0.0
    %950 = vmatpush2.msra.mxu0 0.0
    %951 = vmatprep.subr.mxu0 0.0
    %952 = vmatpush2.msra.mxu0 0.0
    %953 = vmatprep.subr.mxu0 0.0
    %954 = vmatpush2.msra.mxu0 0.0
    %955 = vmatprep.subr.mxu0 0.0
    %956 = vmatpush2.msra.mxu0 0.0
    %957 = vmatprep.subr.mxu0 0.0
    %958 = vmatpush2.msra.mxu0 0.0
    %959 = vmatprep.subr.mxu0 0.0
    %960 = vmatpush2.msra.mxu0 0.0
    %961 = vmatprep.subr.mxu0 0.0
    %962 = vmatpush2.msra.mxu0 0.0
    %963 = vmatprep.subr.mxu0 0.0
    %964 = vmatpush2.msra.mxu0 0.0
    %965 = vmatprep.subr.mxu0 0.0
    %966 = vmatpush2.msra.mxu0 0.0
    %967 = vmatprep.subr.mxu0 0.0
    %968 = vmatpush2.msra.mxu0 0.0
    %969 = vmatprep.subr.mxu0 0.0
    %970 = vmatpush2.msra.mxu0 0.0
    %971 = vmatprep.mubr.f32.mxu0 0.0
    %972 = vmatmul.mubr.f32.gmra.mxu0 %v905
    %v973 = vpop.f32.mrf.mxu0
    %v974 = vadd.f32 0.0, %v973
    %v975 = vpop.f32.mrf.mxu0
    %976 = vdwg.mxu0
    %977 = vrot.lane.b32.xlu0 %v163, 64
    %v978 = vpop.permute.xlu0 %977
    %v981 = vsel %vm182, %v894, 0
    %983 = vmatprep.subr.mxu0 0.0
    %984 = vmatpush1.msra.mxu0 0.0
    %985 = vmatprep.subr.mxu0 0.0
    %986 = vmatpush1.msra.mxu0 0.0
    %987 = vmatprep.subr.mxu0 0.0
    %988 = vmatpush1.msra.mxu0 0.0
    %989 = vmatprep.subr.mxu0 0.0
    %990 = vmatpush1.msra.mxu0 0.0
    %991 = vmatprep.subr.mxu0 0.0
    %992 = vmatpush1.msra.mxu0 0.0
    %993 = vmatprep.subr.mxu0 0.0
    %994 = vmatpush1.msra.mxu0 0.0
    %995 = vmatprep.subr.mxu0 0.0
    %996 = vmatpush1.msra.mxu0 0.0
    %997 = vmatprep.subr.mxu0 0.0
    %998 = vmatpush1.msra.mxu0 0.0
    %999 = vmatprep.subr.mxu0 0.0
    %1000 = vmatpush1.msra.mxu0 0.0
    %1001 = vmatprep.subr.mxu0 0.0
    %1002 = vmatpush1.msra.mxu0 0.0
    %1003 = vmatprep.subr.mxu0 0.0
    %1004 = vmatpush1.msra.mxu0 0.0
    %1005 = vmatprep.subr.mxu0 0.0
    %1006 = vmatpush1.msra.mxu0 0.0
    %1007 = vmatprep.subr.mxu0 0.0
    %1008 = vmatpush1.msra.mxu0 0.0
    %1009 = vmatprep.subr.mxu0 0.0
    %1010 = vmatpush1.msra.mxu0 0.0
    %1011 = vmatprep.subr.mxu0 0.0
    %1012 = vmatpush1.msra.mxu0 0.0
    %1013 = vmatprep.subr.mxu0 0.0
    %1014 = vmatpush1.msra.mxu0 %v978
    %1015 = vmatprep.subr.mxu0 0.0
    %1016 = vmatpush2.msra.mxu0 0.0
    %1017 = vmatprep.subr.mxu0 0.0
    %1018 = vmatpush2.msra.mxu0 0.0
    %1019 = vmatprep.subr.mxu0 0.0
    %1020 = vmatpush2.msra.mxu0 0.0
    %1021 = vmatprep.subr.mxu0 0.0
    %1022 = vmatpush2.msra.mxu0 0.0
    %1023 = vmatprep.subr.mxu0 0.0
    %1024 = vmatpush2.msra.mxu0 0.0
    %1025 = vmatprep.subr.mxu0 0.0
    %1026 = vmatpush2.msra.mxu0 0.0
    %1027 = vmatprep.subr.mxu0 0.0
    %1028 = vmatpush2.msra.mxu0 0.0
    %1029 = vmatprep.subr.mxu0 0.0
    %1030 = vmatpush2.msra.mxu0 0.0
    %1031 = vmatprep.subr.mxu0 0.0
    %1032 = vmatpush2.msra.mxu0 0.0
    %1033 = vmatprep.subr.mxu0 0.0
    %1034 = vmatpush2.msra.mxu0 0.0
    %1035 = vmatprep.subr.mxu0 0.0
    %1036 = vmatpush2.msra.mxu0 0.0
    %1037 = vmatprep.subr.mxu0 0.0
    %1038 = vmatpush2.msra.mxu0 0.0
    %1039 = vmatprep.subr.mxu0 0.0
    %1040 = vmatpush2.msra.mxu0 0.0
    %1041 = vmatprep.subr.mxu0 0.0
    %1042 = vmatpush2.msra.mxu0 0.0
    %1043 = vmatprep.subr.mxu0 0.0
    %1044 = vmatpush2.msra.mxu0 0.0
    %1045 = vmatprep.subr.mxu0 0.0
    %1046 = vmatpush2.msra.mxu0 0.0
    %1047 = vmatprep.mubr.f32.mxu0 0.0
    %1048 = vmatmul.mubr.f32.gmra.mxu0 %v981
    %v1049 = vpop.f32.mrf.mxu0
    %v1050 = vadd.f32 0.0, %v1049
    %v1051 = vpop.f32.mrf.mxu0
    %1052 = vdwg.mxu0
    %1053 = vrot.lane.b32.xlu0 %v169, 64
    %v1054 = vpop.permute.xlu0 %1053
    %v1057 = vsel %vm182, %v895, 0
    %1059 = vmatprep.subr.mxu0 0.0
    %1060 = vmatpush1.msra.mxu0 0.0
    %1061 = vmatprep.subr.mxu0 0.0
    %1062 = vmatpush1.msra.mxu0 0.0
    %1063 = vmatprep.subr.mxu0 0.0
    %1064 = vmatpush1.msra.mxu0 0.0
    %1065 = vmatprep.subr.mxu0 0.0
    %1066 = vmatpush1.msra.mxu0 0.0
    %1067 = vmatprep.subr.mxu0 0.0
    %1068 = vmatpush1.msra.mxu0 0.0
    %1069 = vmatprep.subr.mxu0 0.0
    %1070 = vmatpush1.msra.mxu0 0.0
    %1071 = vmatprep.subr.mxu0 0.0
    %1072 = vmatpush1.msra.mxu0 0.0
    %1073 = vmatprep.subr.mxu0 0.0
    %1074 = vmatpush1.msra.mxu0 0.0
    %1075 = vmatprep.subr.mxu0 0.0
    %1076 = vmatpush1.msra.mxu0 0.0
    %1077 = vmatprep.subr.mxu0 0.0
    %1078 = vmatpush1.msra.mxu0 0.0
    %1079 = vmatprep.subr.mxu0 0.0
    %1080 = vmatpush1.msra.mxu0 0.0
    %1081 = vmatprep.subr.mxu0 0.0
    %1082 = vmatpush1.msra.mxu0 0.0
    %1083 = vmatprep.subr.mxu0 0.0
    %1084 = vmatpush1.msra.mxu0 0.0
    %1085 = vmatprep.subr.mxu0 0.0
    %1086 = vmatpush1.msra.mxu0 0.0
    %1087 = vmatprep.subr.mxu0 0.0
    %1088 = vmatpush1.msra.mxu0 0.0
    %1089 = vmatprep.subr.mxu0 0.0
    %1090 = vmatpush1.msra.mxu0 %v1054
    %1091 = vmatprep.subr.mxu0 0.0
    %1092 = vmatpush2.msra.mxu0 0.0
    %1093 = vmatprep.subr.mxu0 0.0
    %1094 = vmatpush2.msra.mxu0 0.0
    %1095 = vmatprep.subr.mxu0 0.0
    %1096 = vmatpush2.msra.mxu0 0.0
    %1097 = vmatprep.subr.mxu0 0.0
    %1098 = vmatpush2.msra.mxu0 0.0
    %1099 = vmatprep.subr.mxu0 0.0
    %1100 = vmatpush2.msra.mxu0 0.0
    %1101 = vmatprep.subr.mxu0 0.0
    %1102 = vmatpush2.msra.mxu0 0.0
    %1103 = vmatprep.subr.mxu0 0.0
    %1104 = vmatpush2.msra.mxu0 0.0
    %1105 = vmatprep.subr.mxu0 0.0
    %1106 = vmatpush2.msra.mxu0 0.0
    %1107 = vmatprep.subr.mxu0 0.0
    %1108 = vmatpush2.msra.mxu0 0.0
    %1109 = vmatprep.subr.mxu0 0.0
    %1110 = vmatpush2.msra.mxu0 0.0
    %1111 = vmatprep.subr.mxu0 0.0
    %1112 = vmatpush2.msra.mxu0 0.0
    %1113 = vmatprep.subr.mxu0 0.0
    %1114 = vmatpush2.msra.mxu0 0.0
    %1115 = vmatprep.subr.mxu0 0.0
    %1116 = vmatpush2.msra.mxu0 0.0
    %1117 = vmatprep.subr.mxu0 0.0
    %1118 = vmatpush2.msra.mxu0 0.0
    %1119 = vmatprep.subr.mxu0 0.0
    %1120 = vmatpush2.msra.mxu0 0.0
    %1121 = vmatprep.subr.mxu0 0.0
    %1122 = vmatpush2.msra.mxu0 0.0
    %1123 = vmatprep.mubr.f32.mxu0 0.0
    %1124 = vmatmul.mubr.f32.gmra.mxu0 %v1057
    %v1125 = vpop.f32.mrf.mxu0
    %v1126 = vadd.f32 0.0, %v1125
    %v1127 = vpop.f32.mrf.mxu0
    %1128 = vdwg.mxu0
    %1129 = vrot.lane.b32.xlu0 %v171, 64
    %v1130 = vpop.permute.xlu0 %1129
    %v1133 = vsel %vm182, %v896, 0
    %1135 = vmatprep.subr.mxu0 0.0
    %1136 = vmatpush1.msra.mxu0 0.0
    %1137 = vmatprep.subr.mxu0 0.0
    %1138 = vmatpush1.msra.mxu0 0.0
    %1139 = vmatprep.subr.mxu0 0.0
    %1140 = vmatpush1.msra.mxu0 0.0
    %1141 = vmatprep.subr.mxu0 0.0
    %1142 = vmatpush1.msra.mxu0 0.0
    %1143 = vmatprep.subr.mxu0 0.0
    %1144 = vmatpush1.msra.mxu0 0.0
    %1145 = vmatprep.subr.mxu0 0.0
    %1146 = vmatpush1.msra.mxu0 0.0
    %1147 = vmatprep.subr.mxu0 0.0
    %1148 = vmatpush1.msra.mxu0 0.0
    %1149 = vmatprep.subr.mxu0 0.0
    %1150 = vmatpush1.msra.mxu0 0.0
    %1151 = vmatprep.subr.mxu0 0.0
    %1152 = vmatpush1.msra.mxu0 0.0
    %1153 = vmatprep.subr.mxu0 0.0
    %1154 = vmatpush1.msra.mxu0 0.0
    %1155 = vmatprep.subr.mxu0 0.0
    %1156 = vmatpush1.msra.mxu0 0.0
    %1157 = vmatprep.subr.mxu0 0.0
    %1158 = vmatpush1.msra.mxu0 0.0
    %1159 = vmatprep.subr.mxu0 0.0
    %1160 = vmatpush1.msra.mxu0 0.0
    %1161 = vmatprep.subr.mxu0 0.0
    %1162 = vmatpush1.msra.mxu0 0.0
    %1163 = vmatprep.subr.mxu0 0.0
    %1164 = vmatpush1.msra.mxu0 0.0
    %1165 = vmatprep.subr.mxu0 0.0
    %1166 = vmatpush1.msra.mxu0 %v1130
    %1167 = vmatprep.subr.mxu0 0.0
    %1168 = vmatpush2.msra.mxu0 0.0
    %1169 = vmatprep.subr.mxu0 0.0
    %1170 = vmatpush2.msra.mxu0 0.0
    %1171 = vmatprep.subr.mxu0 0.0
    %1172 = vmatpush2.msra.mxu0 0.0
    %1173 = vmatprep.subr.mxu0 0.0
    %1174 = vmatpush2.msra.mxu0 0.0
    %1175 = vmatprep.subr.mxu0 0.0
    %1176 = vmatpush2.msra.mxu0 0.0
    %1177 = vmatprep.subr.mxu0 0.0
    %1178 = vmatpush2.msra.mxu0 0.0
    %1179 = vmatprep.subr.mxu0 0.0
    %1180 = vmatpush2.msra.mxu0 0.0
    %1181 = vmatprep.subr.mxu0 0.0
    %1182 = vmatpush2.msra.mxu0 0.0
    %1183 = vmatprep.subr.mxu0 0.0
    %1184 = vmatpush2.msra.mxu0 0.0
    %1185 = vmatprep.subr.mxu0 0.0
    %1186 = vmatpush2.msra.mxu0 0.0
    %1187 = vmatprep.subr.mxu0 0.0
    %1188 = vmatpush2.msra.mxu0 0.0
    %1189 = vmatprep.subr.mxu0 0.0
    %1190 = vmatpush2.msra.mxu0 0.0
    %1191 = vmatprep.subr.mxu0 0.0
    %1192 = vmatpush2.msra.mxu0 0.0
    %1193 = vmatprep.subr.mxu0 0.0
    %1194 = vmatpush2.msra.mxu0 0.0
    %1195 = vmatprep.subr.mxu0 0.0
    %1196 = vmatpush2.msra.mxu0 0.0
    %1197 = vmatprep.subr.mxu0 0.0
    %1198 = vmatpush2.msra.mxu0 0.0
    %1199 = vmatprep.mubr.f32.mxu0 0.0
    %1200 = vmatmul.mubr.f32.gmra.mxu0 %v1133
    %v1201 = vpop.f32.mrf.mxu0
    %v1202 = vadd.f32 0.0, %v1201
    %v1203 = vpop.f32.mrf.mxu0
    %1204 = vdwg.mxu0
    %1205 = vrot.lane.b32.xlu0 %v173, 64
    %v1206 = vpop.permute.xlu0 %1205
    %v1209 = vsel %vm182, %v897, 0
    %1211 = vmatprep.subr.mxu0 0.0
    %1212 = vmatpush1.msra.mxu0 0.0
    %1213 = vmatprep.subr.mxu0 0.0
    %1214 = vmatpush1.msra.mxu0 0.0
    %1215 = vmatprep.subr.mxu0 0.0
    %1216 = vmatpush1.msra.mxu0 0.0
    %1217 = vmatprep.subr.mxu0 0.0
    %1218 = vmatpush1.msra.mxu0 0.0
    %1219 = vmatprep.subr.mxu0 0.0
    %1220 = vmatpush1.msra.mxu0 0.0
    %1221 = vmatprep.subr.mxu0 0.0
    %1222 = vmatpush1.msra.mxu0 0.0
    %1223 = vmatprep.subr.mxu0 0.0
    %1224 = vmatpush1.msra.mxu0 0.0
    %1225 = vmatprep.subr.mxu0 0.0
    %1226 = vmatpush1.msra.mxu0 0.0
    %1227 = vmatprep.subr.mxu0 0.0
    %1228 = vmatpush1.msra.mxu0 0.0
    %1229 = vmatprep.subr.mxu0 0.0
    %1230 = vmatpush1.msra.mxu0 0.0
    %1231 = vmatprep.subr.mxu0 0.0
    %1232 = vmatpush1.msra.mxu0 0.0
    %1233 = vmatprep.subr.mxu0 0.0
    %1234 = vmatpush1.msra.mxu0 0.0
    %1235 = vmatprep.subr.mxu0 0.0
    %1236 = vmatpush1.msra.mxu0 0.0
    %1237 = vmatprep.subr.mxu0 0.0
    %1238 = vmatpush1.msra.mxu0 0.0
    %1239 = vmatprep.subr.mxu0 0.0
    %1240 = vmatpush1.msra.mxu0 0.0
    %1241 = vmatprep.subr.mxu0 0.0
    %1242 = vmatpush1.msra.mxu0 %v1206
    %1243 = vmatprep.subr.mxu0 0.0
    %1244 = vmatpush2.msra.mxu0 0.0
    %1245 = vmatprep.subr.mxu0 0.0
    %1246 = vmatpush2.msra.mxu0 0.0
    %1247 = vmatprep.subr.mxu0 0.0
    %1248 = vmatpush2.msra.mxu0 0.0
    %1249 = vmatprep.subr.mxu0 0.0
    %1250 = vmatpush2.msra.mxu0 0.0
    %1251 = vmatprep.subr.mxu0 0.0
    %1252 = vmatpush2.msra.mxu0 0.0
    %1253 = vmatprep.subr.mxu0 0.0
    %1254 = vmatpush2.msra.mxu0 0.0
    %1255 = vmatprep.subr.mxu0 0.0
    %1256 = vmatpush2.msra.mxu0 0.0
    %1257 = vmatprep.subr.mxu0 0.0
    %1258 = vmatpush2.msra.mxu0 0.0
    %1259 = vmatprep.subr.mxu0 0.0
    %1260 = vmatpush2.msra.mxu0 0.0
    %1261 = vmatprep.subr.mxu0 0.0
    %1262 = vmatpush2.msra.mxu0 0.0
    %1263 = vmatprep.subr.mxu0 0.0
    %1264 = vmatpush2.msra.mxu0 0.0
    %1265 = vmatprep.subr.mxu0 0.0
    %1266 = vmatpush2.msra.mxu0 0.0
    %1267 = vmatprep.subr.mxu0 0.0
    %1268 = vmatpush2.msra.mxu0 0.0
    %1269 = vmatprep.subr.mxu0 0.0
    %1270 = vmatpush2.msra.mxu0 0.0
    %1271 = vmatprep.subr.mxu0 0.0
    %1272 = vmatpush2.msra.mxu0 0.0
    %1273 = vmatprep.subr.mxu0 0.0
    %1274 = vmatpush2.msra.mxu0 0.0
    %1275 = vmatprep.mubr.f32.mxu0 0.0
    %1276 = vmatmul.mubr.f32.gmra.mxu0 %v1209
    %v1277 = vpop.f32.mrf.mxu0
    %v1278 = vadd.f32 0.0, %v1277
    %v1279 = vpop.f32.mrf.mxu0
    %1280 = vdwg.mxu0
    %1281 = vrot.lane.b32.xlu0 %v175, 64
    %v1282 = vpop.permute.xlu0 %1281
    %v1285 = vsel %vm182, %v898, 0
    %1287 = vmatprep.subr.mxu0 0.0
    %1288 = vmatpush1.msra.mxu0 0.0
    %1289 = vmatprep.subr.mxu0 0.0
    %1290 = vmatpush1.msra.mxu0 0.0
    %1291 = vmatprep.subr.mxu0 0.0
    %1292 = vmatpush1.msra.mxu0 0.0
    %1293 = vmatprep.subr.mxu0 0.0
    %1294 = vmatpush1.msra.mxu0 0.0
    %1295 = vmatprep.subr.mxu0 0.0
    %1296 = vmatpush1.msra.mxu0 0.0
    %1297 = vmatprep.subr.mxu0 0.0
    %1298 = vmatpush1.msra.mxu0 0.0
    %1299 = vmatprep.subr.mxu0 0.0
    %1300 = vmatpush1.msra.mxu0 0.0
    %1301 = vmatprep.subr.mxu0 0.0
    %1302 = vmatpush1.msra.mxu0 0.0
    %1303 = vmatprep.subr.mxu0 0.0
    %1304 = vmatpush1.msra.mxu0 0.0
    %1305 = vmatprep.subr.mxu0 0.0
    %1306 = vmatpush1.msra.mxu0 0.0
    %1307 = vmatprep.subr.mxu0 0.0
    %1308 = vmatpush1.msra.mxu0 0.0
    %1309 = vmatprep.subr.mxu0 0.0
    %1310 = vmatpush1.msra.mxu0 0.0
    %1311 = vmatprep.subr.mxu0 0.0
    %1312 = vmatpush1.msra.mxu0 0.0
    %1313 = vmatprep.subr.mxu0 0.0
    %1314 = vmatpush1.msra.mxu0 0.0
    %1315 = vmatprep.subr.mxu0 0.0
    %1316 = vmatpush1.msra.mxu0 0.0
    %1317 = vmatprep.subr.mxu0 0.0
    %1318 = vmatpush1.msra.mxu0 %v1282
    %1319 = vmatprep.subr.mxu0 0.0
    %1320 = vmatpush2.msra.mxu0 0.0
    %1321 = vmatprep.subr.mxu0 0.0
    %1322 = vmatpush2.msra.mxu0 0.0
    %1323 = vmatprep.subr.mxu0 0.0
    %1324 = vmatpush2.msra.mxu0 0.0
    %1325 = vmatprep.subr.mxu0 0.0
    %1326 = vmatpush2.msra.mxu0 0.0
    %1327 = vmatprep.subr.mxu0 0.0
    %1328 = vmatpush2.msra.mxu0 0.0
    %1329 = vmatprep.subr.mxu0 0.0
    %1330 = vmatpush2.msra.mxu0 0.0
    %1331 = vmatprep.subr.mxu0 0.0
    %1332 = vmatpush2.msra.mxu0 0.0
    %1333 = vmatprep.subr.mxu0 0.0
    %1334 = vmatpush2.msra.mxu0 0.0
    %1335 = vmatprep.subr.mxu0 0.0
    %1336 = vmatpush2.msra.mxu0 0.0
    %1337 = vmatprep.subr.mxu0 0.0
    %1338 = vmatpush2.msra.mxu0 0.0
    %1339 = vmatprep.subr.mxu0 0.0
    %1340 = vmatpush2.msra.mxu0 0.0
    %1341 = vmatprep.subr.mxu0 0.0
    %1342 = vmatpush2.msra.mxu0 0.0
    %1343 = vmatprep.subr.mxu0 0.0
    %1344 = vmatpush2.msra.mxu0 0.0
    %1345 = vmatprep.subr.mxu0 0.0
    %1346 = vmatpush2.msra.mxu0 0.0
    %1347 = vmatprep.subr.mxu0 0.0
    %1348 = vmatpush2.msra.mxu0 0.0
    %1349 = vmatprep.subr.mxu0 0.0
    %1350 = vmatpush2.msra.mxu0 0.0
    %1351 = vmatprep.mubr.f32.mxu0 0.0
    %1352 = vmatmul.mubr.f32.gmra.mxu0 %v1285
    %v1353 = vpop.f32.mrf.mxu0
    %v1354 = vadd.f32 0.0, %v1353
    %v1355 = vpop.f32.mrf.mxu0
    %1356 = vdwg.mxu0
    %1357 = vrot.lane.b32.xlu0 %v177, 64
    %v1358 = vpop.permute.xlu0 %1357
    %v1361 = vsel %vm182, %v899, 0
    %1363 = vmatprep.subr.mxu0 0.0
    %1364 = vmatpush1.msra.mxu0 0.0
    %1365 = vmatprep.subr.mxu0 0.0
    %1366 = vmatpush1.msra.mxu0 0.0
    %1367 = vmatprep.subr.mxu0 0.0
    %1368 = vmatpush1.msra.mxu0 0.0
    %1369 = vmatprep.subr.mxu0 0.0
    %1370 = vmatpush1.msra.mxu0 0.0
    %1371 = vmatprep.subr.mxu0 0.0
    %1372 = vmatpush1.msra.mxu0 0.0
    %1373 = vmatprep.subr.mxu0 0.0
    %1374 = vmatpush1.msra.mxu0 0.0
    %1375 = vmatprep.subr.mxu0 0.0
    %1376 = vmatpush1.msra.mxu0 0.0
    %1377 = vmatprep.subr.mxu0 0.0
    %1378 = vmatpush1.msra.mxu0 0.0
    %1379 = vmatprep.subr.mxu0 0.0
    %1380 = vmatpush1.msra.mxu0 0.0
    %1381 = vmatprep.subr.mxu0 0.0
    %1382 = vmatpush1.msra.mxu0 0.0
    %1383 = vmatprep.subr.mxu0 0.0
    %1384 = vmatpush1.msra.mxu0 0.0
    %1385 = vmatprep.subr.mxu0 0.0
    %1386 = vmatpush1.msra.mxu0 0.0
    %1387 = vmatprep.subr.mxu0 0.0
    %1388 = vmatpush1.msra.mxu0 0.0
    %1389 = vmatprep.subr.mxu0 0.0
    %1390 = vmatpush1.msra.mxu0 0.0
    %1391 = vmatprep.subr.mxu0 0.0
    %1392 = vmatpush1.msra.mxu0 0.0
    %1393 = vmatprep.subr.mxu0 0.0
    %1394 = vmatpush1.msra.mxu0 %v1358
    %1395 = vmatprep.subr.mxu0 0.0
    %1396 = vmatpush2.msra.mxu0 0.0
    %1397 = vmatprep.subr.mxu0 0.0
    %1398 = vmatpush2.msra.mxu0 0.0
    %1399 = vmatprep.subr.mxu0 0.0
    %1400 = vmatpush2.msra.mxu0 0.0
    %1401 = vmatprep.subr.mxu0 0.0
    %1402 = vmatpush2.msra.mxu0 0.0
    %1403 = vmatprep.subr.mxu0 0.0
    %1404 = vmatpush2.msra.mxu0 0.0
    %1405 = vmatprep.subr.mxu0 0.0
    %1406 = vmatpush2.msra.mxu0 0.0
    %1407 = vmatprep.subr.mxu0 0.0
    %1408 = vmatpush2.msra.mxu0 0.0
    %1409 = vmatprep.subr.mxu0 0.0
    %1410 = vmatpush2.msra.mxu0 0.0
    %1411 = vmatprep.subr.mxu0 0.0
    %1412 = vmatpush2.msra.mxu0 0.0
    %1413 = vmatprep.subr.mxu0 0.0
    %1414 = vmatpush2.msra.mxu0 0.0
    %1415 = vmatprep.subr.mxu0 0.0
    %1416 = vmatpush2.msra.mxu0 0.0
    %1417 = vmatprep.subr.mxu0 0.0
    %1418 = vmatpush2.msra.mxu0 0.0
    %1419 = vmatprep.subr.mxu0 0.0
    %1420 = vmatpush2.msra.mxu0 0.0
    %1421 = vmatprep.subr.mxu0 0.0
    %1422 = vmatpush2.msra.mxu0 0.0
    %1423 = vmatprep.subr.mxu0 0.0
    %1424 = vmatpush2.msra.mxu0 0.0
    %1425 = vmatprep.subr.mxu0 0.0
    %1426 = vmatpush2.msra.mxu0 0.0
    %1427 = vmatprep.mubr.f32.mxu0 0.0
    %1428 = vmatmul.mubr.f32.gmra.mxu0 %v1361
    %v1429 = vpop.f32.mrf.mxu0
    %v1430 = vadd.f32 0.0, %v1429
    %v1431 = vpop.f32.mrf.mxu0
    %1432 = vdwg.mxu0
    %1433 = vrot.lane.b32.xlu0 %v179, 64
    %v1434 = vpop.permute.xlu0 %1433
    %v1437 = vsel %vm182, %v900, 0
    %1439 = vmatprep.subr.mxu0 0.0
    %1440 = vmatpush1.msra.mxu0 0.0
    %1441 = vmatprep.subr.mxu0 0.0
    %1442 = vmatpush1.msra.mxu0 0.0
    %1443 = vmatprep.subr.mxu0 0.0
    %1444 = vmatpush1.msra.mxu0 0.0
    %1445 = vmatprep.subr.mxu0 0.0
    %1446 = vmatpush1.msra.mxu0 0.0
    %1447 = vmatprep.subr.mxu0 0.0
    %1448 = vmatpush1.msra.mxu0 0.0
    %1449 = vmatprep.subr.mxu0 0.0
    %1450 = vmatpush1.msra.mxu0 0.0
    %1451 = vmatprep.subr.mxu0 0.0
    %1452 = vmatpush1.msra.mxu0 0.0
    %1453 = vmatprep.subr.mxu0 0.0
    %1454 = vmatpush1.msra.mxu0 0.0
    %1455 = vmatprep.subr.mxu0 0.0
    %1456 = vmatpush1.msra.mxu0 0.0
    %1457 = vmatprep.subr.mxu0 0.0
    %1458 = vmatpush1.msra.mxu0 0.0
    %1459 = vmatprep.subr.mxu0 0.0
    %1460 = vmatpush1.msra.mxu0 0.0
    %1461 = vmatprep.subr.mxu0 0.0
    %1462 = vmatpush1.msra.mxu0 0.0
    %1463 = vmatprep.subr.mxu0 0.0
    %1464 = vmatpush1.msra.mxu0 0.0
    %1465 = vmatprep.subr.mxu0 0.0
    %1466 = vmatpush1.msra.mxu0 0.0
    %1467 = vmatprep.subr.mxu0 0.0
    %1468 = vmatpush1.msra.mxu0 0.0
    %1469 = vmatprep.subr.mxu0 0.0
    %1470 = vmatpush1.msra.mxu0 %v1434
    %1471 = vmatprep.subr.mxu0 0.0
    %1472 = vmatpush2.msra.mxu0 0.0
    %1473 = vmatprep.subr.mxu0 0.0
    %1474 = vmatpush2.msra.mxu0 0.0
    %1475 = vmatprep.subr.mxu0 0.0
    %1476 = vmatpush2.msra.mxu0 0.0
    %1477 = vmatprep.subr.mxu0 0.0
    %1478 = vmatpush2.msra.mxu0 0.0
    %1479 = vmatprep.subr.mxu0 0.0
    %1480 = vmatpush2.msra.mxu0 0.0
    %1481 = vmatprep.subr.mxu0 0.0
    %1482 = vmatpush2.msra.mxu0 0.0
    %1483 = vmatprep.subr.mxu0 0.0
    %1484 = vmatpush2.msra.mxu0 0.0
    %1485 = vmatprep.subr.mxu0 0.0
    %1486 = vmatpush2.msra.mxu0 0.0
    %1487 = vmatprep.subr.mxu0 0.0
    %1488 = vmatpush2.msra.mxu0 0.0
    %1489 = vmatprep.subr.mxu0 0.0
    %1490 = vmatpush2.msra.mxu0 0.0
    %1491 = vmatprep.subr.mxu0 0.0
    %1492 = vmatpush2.msra.mxu0 0.0
    %1493 = vmatprep.subr.mxu0 0.0
    %1494 = vmatpush2.msra.mxu0 0.0
    %1495 = vmatprep.subr.mxu0 0.0
    %1496 = vmatpush2.msra.mxu0 0.0
    %1497 = vmatprep.subr.mxu0 0.0
    %1498 = vmatpush2.msra.mxu0 0.0
    %1499 = vmatprep.subr.mxu0 0.0
    %1500 = vmatpush2.msra.mxu0 0.0
    %1501 = vmatprep.subr.mxu0 0.0
    %1502 = vmatpush2.msra.mxu0 0.0
    %1503 = vmatprep.mubr.f32.mxu0 0.0
    %1504 = vmatmul.mubr.f32.gmra.mxu0 %v1437
    %v1505 = vpop.f32.mrf.mxu0
    %v1506 = vadd.f32 0.0, %v1505
    %v1507 = vpop.f32.mrf.mxu0
    %1508 = vdwg.mxu0
    %1511 = vrot.lane.b32.xlu0 %v1126, 8
    %v1512 = vpop.permute.xlu0 %1511
    %1513 = vrot.lane.b32.xlu0 %v1202, 8
    %v1514 = vpop.permute.xlu0 %1513
    %1519 = vrot.lane.b32.xlu0 %v1278, 16
    %v1520 = vpop.permute.xlu0 %1519
    %1521 = vrot.lane.b32.xlu0 %v1354, 16
    %v1522 = vpop.permute.xlu0 %1521
    %1527 = vrot.lane.b32.xlu0 %v1430, 24
    %v1528 = vpop.permute.xlu0 %1527
    %1529 = vrot.lane.b32.xlu0 %v1506, 24
    %v1530 = vpop.permute.xlu0 %1529
    %v1533 = vsel %vm182, %v974, %v1512
    %v1534 = vsel %vm182, %v1050, %v1514
    %vm1535 = vcmask 130048
    %v1536 = vsel %vm1535, %v1533, %v1520
    %v1537 = vsel %vm1535, %v1534, %v1522
    %vm1538 = vcmask 195584
    %v1539 = vsel %vm1538, %v1536, %v1528
    %v1540 = vsel %vm1538, %v1537, %v1530
    %v1541 = vld [vmem:[#allocation7 + $0x20] sm:$0xff]
    %v1542 = vld [vmem:[#allocation7 + $0x28] sm:$0xff]
    %v1543 = vld [vmem:[#allocation7 + $0x30] sm:$0xff]
    %v1544 = vld [vmem:[#allocation7 + $0x38] sm:$0xff]
    %v1545 = vld [vmem:[#allocation8 + $0x1] sm:$0x1]
    %v1546 = vlaneseq
    %v1547 = vshrl.u32 %v1546, 7
    %v1548 = vsub.s32 0, %v1547
    %v1549 = vrot.slane %v1545, %v1548
    %v1551 = vsel %vm84, %v1539, 0
    %v1554 = vsel %vm84, %v1540, 0
    %1556 = vmatprep.subr.mxu0 0.0
    %1557 = vmatpush1.msra.mxu0 0.0
    %1558 = vmatprep.subr.mxu0 0.0
    %1559 = vmatpush1.msra.mxu0 0.0
    %1560 = vmatprep.subr.mxu0 0.0
    %1561 = vmatpush1.msra.mxu0 0.0
    %1562 = vmatprep.subr.mxu0 0.0
    %1563 = vmatpush1.msra.mxu0 0.0
    %1564 = vmatprep.subr.mxu0 0.0
    %1565 = vmatpush1.msra.mxu0 0.0
    %1566 = vmatprep.subr.mxu0 0.0
    %1567 = vmatpush1.msra.mxu0 0.0
    %1568 = vmatprep.subr.mxu0 0.0
    %1569 = vmatpush1.msra.mxu0 0.0
    %1570 = vmatprep.subr.mxu0 0.0
    %1571 = vmatpush1.msra.mxu0 0.0
    %1572 = vmatprep.subr.mxu0 0.0
    %1573 = vmatpush1.msra.mxu0 0.0
    %1574 = vmatprep.subr.mxu0 0.0
    %1575 = vmatpush1.msra.mxu0 0.0
    %1576 = vmatprep.subr.mxu0 0.0
    %1577 = vmatpush1.msra.mxu0 0.0
    %1578 = vmatprep.subr.mxu0 0.0
    %1579 = vmatpush1.msra.mxu0 0.0
    %1580 = vmatprep.subr.mxu0 0.0
    %1581 = vmatpush1.msra.mxu0 %v1544
    %1582 = vmatprep.subr.mxu0 0.0
    %1583 = vmatpush1.msra.mxu0 %v1543
    %1584 = vmatprep.subr.mxu0 0.0
    %1585 = vmatpush1.msra.mxu0 %v1542
    %1586 = vmatprep.subr.mxu0 0.0
    %1587 = vmatpush1.msra.mxu0 %v1541
    %1588 = vmatprep.subr.mxu0 0.0
    %1589 = vmatpush2.msra.mxu0 0.0
    %1590 = vmatprep.subr.mxu0 0.0
    %1591 = vmatpush2.msra.mxu0 0.0
    %1592 = vmatprep.subr.mxu0 0.0
    %1593 = vmatpush2.msra.mxu0 0.0
    %1594 = vmatprep.subr.mxu0 0.0
    %1595 = vmatpush2.msra.mxu0 0.0
    %1596 = vmatprep.subr.mxu0 0.0
    %1597 = vmatpush2.msra.mxu0 0.0
    %1598 = vmatprep.subr.mxu0 0.0
    %1599 = vmatpush2.msra.mxu0 0.0
    %1600 = vmatprep.subr.mxu0 0.0
    %1601 = vmatpush2.msra.mxu0 0.0
    %1602 = vmatprep.subr.mxu0 0.0
    %1603 = vmatpush2.msra.mxu0 0.0
    %1604 = vmatprep.subr.mxu0 0.0
    %1605 = vmatpush2.msra.mxu0 0.0
    %1606 = vmatprep.subr.mxu0 0.0
    %1607 = vmatpush2.msra.mxu0 0.0
    %1608 = vmatprep.subr.mxu0 0.0
    %1609 = vmatpush2.msra.mxu0 0.0
    %1610 = vmatprep.subr.mxu0 0.0
    %1611 = vmatpush2.msra.mxu0 0.0
    %1612 = vmatprep.subr.mxu0 0.0
    %1613 = vmatpush2.msra.mxu0 0.0
    %1614 = vmatprep.subr.mxu0 0.0
    %1615 = vmatpush2.msra.mxu0 0.0
    %1616 = vmatprep.subr.mxu0 0.0
    %1617 = vmatpush2.msra.mxu0 0.0
    %1618 = vmatprep.subr.mxu0 0.0
    %1619 = vmatpush2.msra.mxu0 0.0
    %1620 = vmatprep.mubr.f32.mxu0 0.0
    %1621 = vmatmul.mubr.f32.gmra.mxu0 %v1551
    %v1622 = vpop.f32.mrf.mxu0
    %v1623 = vadd.f32 %v1549, %v1622
    %v1624 = vpop.f32.mrf.mxu0
    %1625 = vmatprep.mubr.f32.mxu0 0.0
    %1626 = vmatmul.mubr.f32.gmra.mxu0 %v1554
    %v1627 = vpop.f32.mrf.mxu0
    %v1628 = vadd.f32 %v1549, %v1627
    %v1629 = vpop.f32.mrf.mxu0
    %1630 = vdwg.mxu0
    %v1631 = vadd.f32 %v71, %v1623
    %v1632 = vadd.f32 %v72, %v1628
    %v1633 = vsel %vm84, %v1631, 0.0
    %1634 = vadd.xlane.f32.xlu0 %v1633
    %v1635 = vpop.xlane.xlu0 %1634
    %v1636 = vsel %vm84, %v1632, 0.0
    %1637 = vadd.xlane.f32.xlu0 %v1636
    %v1638 = vpop.xlane.xlu0 %1637
    %v1639 = vrcp.pop 32.0
    %v1640 = vmul.f32 %v1635, %v1639
    %v1641 = vmul.f32 %v1638, %v1639
    %v1642 = vsub.f32 %v1631, %v1640
    %v1643 = vsub.f32 %v1632, %v1641
    %v1644 = vmul.f32 %v1642, %v1642
    %v1645 = vmul.f32 %v1643, %v1643
    %v1646 = vsel %vm84, %v1644, 0.0
    %1647 = vadd.xlane.f32.xlu0 %v1646
    %v1648 = vpop.xlane.xlu0 %1647
    %v1649 = vsel %vm84, %v1645, 0.0
    %1650 = vadd.xlane.f32.xlu0 %v1649
    %v1651 = vpop.xlane.xlu0 %1650
    %v1652 = vmul.f32 %v1648, %v1639
    %v1653 = vmul.f32 %v1651, %v1639
    %v1654 = vadd.f32 %v1652, 1e-06
    %v1655 = vadd.f32 %v1653, 1e-06
    %v1656 = vrsqrt.pop %v1654
    %v1657 = vrsqrt.pop %v1655
    %v1658 = vmul.f32 %v1642, %v1656
    %v1659 = vmul.f32 %v1643, %v1657
    %v1660 = vlaneseq
    %v1661 = vshrl.u32 %v1660, 7
    %v1662 = vsub.s32 0, %v1661
    %v1663 = vrot.slane %v73, %v1662
    %v1664 = vmul.f32 %v1658, %v1663
    %v1665 = vmul.f32 %v1659, %v1663
    %v1666 = vlaneseq
    %v1667 = vshrl.u32 %v1666, 7
    %v1668 = vsub.s32 0, %v1667
    %v1669 = vrot.slane %v74, %v1668
    %v1670 = vadd.f32 %v1664, %v1669
    %v1671 = vadd.f32 %v1665, %v1669
    %v1672 = vld [vmem:[#allocation7 + $0x40] sm:$0xff]
    %v1673 = vld [vmem:[#allocation7 + $0x48] sm:$0xff]
    %v1674 = vld [vmem:[#allocation7 + $0x50] sm:$0xff]
    %v1675 = vld [vmem:[#allocation7 + $0x58] sm:$0xff]
    %v1676 = vld [vmem:[#allocation8 + $0x4] sm:$0x1]
    %v1677 = vlaneseq
    %v1678 = vshrl.u32 %v1677, 7
    %v1679 = vsub.s32 0, %v1678
    %v1680 = vrot.slane %v1676, %v1679
    %v1682 = vsel %vm84, %v1670, 0
    %v1685 = vsel %vm84, %v1671, 0
    %1687 = vmatprep.subr.mxu0 0.0
    %1688 = vmatpush1.msra.mxu0 0.0
    %1689 = vmatprep.subr.mxu0 0.0
    %1690 = vmatpush1.msra.mxu0 0.0
    %1691 = vmatprep.subr.mxu0 0.0
    %1692 = vmatpush1.msra.mxu0 0.0
    %1693 = vmatprep.subr.mxu0 0.0
    %1694 = vmatpush1.msra.mxu0 0.0
    %1695 = vmatprep.subr.mxu0 0.0
    %1696 = vmatpush1.msra.mxu0 0.0
    %1697 = vmatprep.subr.mxu0 0.0
    %1698 = vmatpush1.msra.mxu0 0.0
    %1699 = vmatprep.subr.mxu0 0.0
    %1700 = vmatpush1.msra.mxu0 0.0
    %1701 = vmatprep.subr.mxu0 0.0
    %1702 = vmatpush1.msra.mxu0 0.0
    %1703 = vmatprep.subr.mxu0 0.0
    %1704 = vmatpush1.msra.mxu0 0.0
    %1705 = vmatprep.subr.mxu0 0.0
    %1706 = vmatpush1.msra.mxu0 0.0
    %1707 = vmatprep.subr.mxu0 0.0
    %1708 = vmatpush1.msra.mxu0 0.0
    %1709 = vmatprep.subr.mxu0 0.0
    %1710 = vmatpush1.msra.mxu0 0.0
    %1711 = vmatprep.subr.mxu0 0.0
    %1712 = vmatpush1.msra.mxu0 %v1675
    %1713 = vmatprep.subr.mxu0 0.0
    %1714 = vmatpush1.msra.mxu0 %v1674
    %1715 = vmatprep.subr.mxu0 0.0
    %1716 = vmatpush1.msra.mxu0 %v1673
    %1717 = vmatprep.subr.mxu0 0.0
    %1718 = vmatpush1.msra.mxu0 %v1672
    %1719 = vmatprep.subr.mxu0 0.0
    %1720 = vmatpush2.msra.mxu0 0.0
    %1721 = vmatprep.subr.mxu0 0.0
    %1722 = vmatpush2.msra.mxu0 0.0
    %1723 = vmatprep.subr.mxu0 0.0
    %1724 = vmatpush2.msra.mxu0 0.0
    %1725 = vmatprep.subr.mxu0 0.0
    %1726 = vmatpush2.msra.mxu0 0.0
    %1727 = vmatprep.subr.mxu0 0.0
    %1728 = vmatpush2.msra.mxu0 0.0
    %1729 = vmatprep.subr.mxu0 0.0
    %1730 = vmatpush2.msra.mxu0 0.0
    %1731 = vmatprep.subr.mxu0 0.0
    %1732 = vmatpush2.msra.mxu0 0.0
    %1733 = vmatprep.subr.mxu0 0.0
    %1734 = vmatpush2.msra.mxu0 0.0
    %1735 = vmatprep.subr.mxu0 0.0
    %1736 = vmatpush2.msra.mxu0 0.0
    %1737 = vmatprep.subr.mxu0 0.0
    %1738 = vmatpush2.msra.mxu0 0.0
    %1739 = vmatprep.subr.mxu0 0.0
    %1740 = vmatpush2.msra.mxu0 0.0
    %1741 = vmatprep.subr.mxu0 0.0
    %1742 = vmatpush2.msra.mxu0 0.0
    %1743 = vmatprep.subr.mxu0 0.0
    %1744 = vmatpush2.msra.mxu0 0.0
    %1745 = vmatprep.subr.mxu0 0.0
    %1746 = vmatpush2.msra.mxu0 0.0
    %1747 = vmatprep.subr.mxu0 0.0
    %1748 = vmatpush2.msra.mxu0 0.0
    %1749 = vmatprep.subr.mxu0 0.0
    %1750 = vmatpush2.msra.mxu0 0.0
    %1751 = vmatprep.mubr.f32.mxu0 0.0
    %1752 = vmatmul.mubr.f32.gmra.mxu0 %v1682
    %v1753 = vpop.f32.mrf.mxu0
    %v1754 = vadd.f32 %v1680, %v1753
    %v1755 = vpop.f32.mrf.mxu0
    %1756 = vmatprep.mubr.f32.mxu0 0.0
    %1757 = vmatmul.mubr.f32.gmra.mxu0 %v1685
    %v1758 = vpop.f32.mrf.mxu0
    %v1759 = vadd.f32 %v1680, %v1758
    %v1760 = vpop.f32.mrf.mxu0
    %1761 = vdwg.mxu0
    %v1762 = vmax.f32 %v1754, 0.0
    %v1763 = vmax.f32 %v1759, 0.0
    %v1764 = vld [vmem:[#allocation7 + $0x60] sm:$0xff]
    %v1765 = vld [vmem:[#allocation7 + $0x68] sm:$0xff]
    %v1766 = vld [vmem:[#allocation7 + $0x70] sm:$0xff]
    %v1767 = vld [vmem:[#allocation7 + $0x78] sm:$0xff]
    %v1768 = vld [vmem:[#allocation7 + $0x80] sm:$0xff]
    %v1769 = vld [vmem:[#allocation7 + $0x88] sm:$0xff]
    %v1770 = vld [vmem:[#allocation7 + $0x90] sm:$0xff]
    %v1771 = vld [vmem:[#allocation7 + $0x98] sm:$0xff]
    %v1772 = vld [vmem:[#allocation8 + $0x5] sm:$0x1]
    %v1773 = vlaneseq
    %v1774 = vshrl.u32 %v1773, 7
    %v1775 = vsub.s32 0, %v1774
    %v1776 = vrot.slane %v1772, %v1775
    %vm1777 = vcmask 523264
    %v1779 = vsel %vm1777, %v1762, 0
    %v1782 = vsel %vm1777, %v1763, 0
    %1784 = vmatprep.subr.mxu0 0.0
    %1785 = vmatpush1.msra.mxu0 0.0
    %1786 = vmatprep.subr.mxu0 0.0
    %1787 = vmatpush1.msra.mxu0 0.0
    %1788 = vmatprep.subr.mxu0 0.0
    %1789 = vmatpush1.msra.mxu0 0.0
    %1790 = vmatprep.subr.mxu0 0.0
    %1791 = vmatpush1.msra.mxu0 0.0
    %1792 = vmatprep.subr.mxu0 0.0
    %1793 = vmatpush1.msra.mxu0 0.0
    %1794 = vmatprep.subr.mxu0 0.0
    %1795 = vmatpush1.msra.mxu0 0.0
    %1796 = vmatprep.subr.mxu0 0.0
    %1797 = vmatpush1.msra.mxu0 0.0
    %1798 = vmatprep.subr.mxu0 0.0
    %1799 = vmatpush1.msra.mxu0 0.0
    %1800 = vmatprep.subr.mxu0 0.0
    %1801 = vmatpush1.msra.mxu0 %v1771
    %1802 = vmatprep.subr.mxu0 0.0
    %1803 = vmatpush1.msra.mxu0 %v1770
    %1804 = vmatprep.subr.mxu0 0.0
    %1805 = vmatpush1.msra.mxu0 %v1769
    %1806 = vmatprep.subr.mxu0 0.0
    %1807 = vmatpush1.msra.mxu0 %v1768
    %1808 = vmatprep.subr.mxu0 0.0
    %1809 = vmatpush1.msra.mxu0 %v1767
    %1810 = vmatprep.subr.mxu0 0.0
    %1811 = vmatpush1.msra.mxu0 %v1766
    %1812 = vmatprep.subr.mxu0 0.0
    %1813 = vmatpush1.msra.mxu0 %v1765
    %1814 = vmatprep.subr.mxu0 0.0
    %1815 = vmatpush1.msra.mxu0 %v1764
    %1816 = vmatprep.subr.mxu0 0.0
    %1817 = vmatpush2.msra.mxu0 0.0
    %1818 = vmatprep.subr.mxu0 0.0
    %1819 = vmatpush2.msra.mxu0 0.0
    %1820 = vmatprep.subr.mxu0 0.0
    %1821 = vmatpush2.msra.mxu0 0.0
    %1822 = vmatprep.subr.mxu0 0.0
    %1823 = vmatpush2.msra.mxu0 0.0
    %1824 = vmatprep.subr.mxu0 0.0
    %1825 = vmatpush2.msra.mxu0 0.0
    %1826 = vmatprep.subr.mxu0 0.0
    %1827 = vmatpush2.msra.mxu0 0.0
    %1828 = vmatprep.subr.mxu0 0.0
    %1829 = vmatpush2.msra.mxu0 0.0
    %1830 = vmatprep.subr.mxu0 0.0
    %1831 = vmatpush2.msra.mxu0 0.0
    %1832 = vmatprep.subr.mxu0 0.0
    %1833 = vmatpush2.msra.mxu0 0.0
    %1834 = vmatprep.subr.mxu0 0.0
    %1835 = vmatpush2.msra.mxu0 0.0
    %1836 = vmatprep.subr.mxu0 0.0
    %1837 = vmatpush2.msra.mxu0 0.0
    %1838 = vmatprep.subr.mxu0 0.0
    %1839 = vmatpush2.msra.mxu0 0.0
    %1840 = vmatprep.subr.mxu0 0.0
    %1841 = vmatpush2.msra.mxu0 0.0
    %1842 = vmatprep.subr.mxu0 0.0
    %1843 = vmatpush2.msra.mxu0 0.0
    %1844 = vmatprep.subr.mxu0 0.0
    %1845 = vmatpush2.msra.mxu0 0.0
    %1846 = vmatprep.subr.mxu0 0.0
    %1847 = vmatpush2.msra.mxu0 0.0
    %1848 = vmatprep.mubr.f32.mxu0 0.0
    %1849 = vmatmul.mubr.f32.gmra.mxu0 %v1779
    %v1850 = vpop.f32.mrf.mxu0
    %v1851 = vadd.f32 %v1776, %v1850
    %v1852 = vpop.f32.mrf.mxu0
    %1853 = vmatprep.mubr.f32.mxu0 0.0
    %1854 = vmatmul.mubr.f32.gmra.mxu0 %v1782
    %v1855 = vpop.f32.mrf.mxu0
    %v1856 = vadd.f32 %v1776, %v1855
    %v1857 = vpop.f32.mrf.mxu0
    %1858 = vdwg.mxu0
    %v1859 = vadd.f32 %v1670, %v1851
    %v1860 = vadd.f32 %v1671, %v1856
    %v1861 = vsel %vm84, %v1859, 0.0
    %1862 = vadd.xlane.f32.xlu0 %v1861
    %v1863 = vpop.xlane.xlu0 %1862
    %v1864 = vsel %vm84, %v1860, 0.0
    %1865 = vadd.xlane.f32.xlu0 %v1864
    %v1866 = vpop.xlane.xlu0 %1865
    %v1867 = vmul.f32 %v1863, %v1639
    %v1868 = vmul.f32 %v1866, %v1639
    %v1869 = vsub.f32 %v1859, %v1867
    %v1870 = vsub.f32 %v1860, %v1868
    %v1871 = vmul.f32 %v1869, %v1869
    %v1872 = vmul.f32 %v1870, %v1870
    %v1873 = vsel %vm84, %v1871, 0.0
    %1874 = vadd.xlane.f32.xlu0 %v1873
    %v1875 = vpop.xlane.xlu0 %1874
    %v1876 = vsel %vm84, %v1872, 0.0
    %1877 = vadd.xlane.f32.xlu0 %v1876
    %v1878 = vpop.xlane.xlu0 %1877
    %v1879 = vmul.f32 %v1875, %v1639
    %v1880 = vmul.f32 %v1878, %v1639
    %v1881 = vadd.f32 %v1879, 1e-06
    %v1882 = vadd.f32 %v1880, 1e-06
    %v1883 = vrsqrt.pop %v1881
    %v1884 = vrsqrt.pop %v1882
    %v1885 = vmul.f32 %v1869, %v1883
    %v1886 = vmul.f32 %v1870, %v1884
    %v1887 = vmul.f32 %v1885, %v1663
    %v1888 = vmul.f32 %v1886, %v1663
    %v1889 = vadd.f32 %v1887, %v1669
    %v1890 = vadd.f32 %v1888, %v1669
    %1891 = vst.msk [vmem:[#allocation10] sm:$0xff] %vm84, %v1889
    %1892 = vst.msk [vmem:[#allocation10 + $0x8] sm:$0xff] %vm84, %v1890
    // Predicated region
    $region34: #{tpu_custom_call.1} parent=1 // pred_check
      _
    $region35: #{tpu_custom_call.1} parent=1 // pred_check_branch
      %1894 = sbr.rel (0) target = $region37
    $region36: #{tpu_custom_call.1} parent=1 // pred_region
      %s1896 = ssub.s32 256, 256
      %1897 = vsyncadd [#allocation4], %s1896
      %s1898 = sshll.u32 [#allocation10], 4
      %s1899 = int_to_ptr.vmem [resolvable:$true] %s1898
      %1904 = dma.vmem_to_hbm [thread:$0]  %s1899, 256, %s4, [#allocation4], 128, 128, 8
    $region37: #{tpu_custom_call.1} parent=1 // pred_fallthru
      _
    // Predicated region
    $region38: #{tpu_custom_call.1} parent=1 // pred_check
      _
    $region39: #{tpu_custom_call.1} parent=1 // pred_check_branch
      %1906 = sbr.rel (0) target = $region41
    $region40: #{tpu_custom_call.1} parent=1 // pred_region
      %1907 = dma.done [#allocation4], 256
    $region41: #{tpu_custom_call.1} parent=1 // pred_fallthru
      _
    %1908 = vsyncpa [#allocation3], 1
    %1909 = vsyncpa [#allocation6], 1
    %1910 = vsyncpa [#allocation9], 1
    %1911 = vsyncpa [#allocation4], 1

</llo_original>
